<compile_context>
chip_gen: v7x
topology: tpu7x:2x2x1
jax: 0.10.0
libtpu: 0.0.40
codegen_flags: <defaults>
</compile_context>

<pallas_src>
import jax
import jax.numpy as jnp
from jax.experimental import pallas as pl
from jax.experimental.pallas import tpu as pltpu

TEMPERATURE = 0.1
EPS = 1e-12  # F.normalize eps
WEIGHTS = {
    "info_nce": 1.0,
    "cls": 1.0,
    "bio": 0.5,
    "cloth": 0.5,
    "cloth_adv": 0.1,
    "cloth_match": 1.0,
    "decouple": 0.2,
    "gate_regularization": 0.01,
    "fusion_gate_regularization": 0.01,
}
LOSS_ORDER = (
    "info_nce", "cls", "bio", "cloth", "cloth_adv", "cloth_match",
    "decouple", "gate_regularization", "fusion_gate_regularization",
)


# ---------------------------------------------------------------------------
# Pallas kernel: all loss terms + weighted total in one grid-less invocation.
# ---------------------------------------------------------------------------
def advanced_loss_kernel(img_ref, idtxt_ref, cltxt_ref, climg_ref,
                         id768_ref, cl768_ref, logits_ref, pids_ref,
                         gate_ref, fgate_ref, b_ref, w_hbm_ref,
                         out_ref, w_vmem, w_sem):
    f32 = jnp.float32
    B = img_ref.shape[0]
    E = img_ref.shape[1]
    C = logits_ref.shape[1]
    inv_t = 1.0 / TEMPERATURE

    # Kick off the projector-weight DMA (the single largest input). Everything in the
    # "weight-independent" section below overlaps with it.
    w_copy = pltpu.make_async_copy(w_hbm_ref, w_vmem, w_sem)
    w_copy.start()

    def dot_t(a, b):
        # a (M,K) contracted with b (N,K) on the last dims -> (M,N); no RHS transpose.
        return jax.lax.dot_general(a, b, (((1,), (1,)), ((), ())),
                                   preferred_element_type=f32)

    def l2norm(x):
        # F.normalize(x, dim=-1, eps=EPS): x / max(||x||, eps) == x * rsqrt(max(ss, eps^2))
        ss = jnp.sum(x * x, axis=-1, keepdims=True)
        return x * jax.lax.rsqrt(jnp.maximum(ss, EPS * EPS))

    def lse_rows(x):  # (B,N) -> (B,1)
        m = jnp.max(x, axis=-1, keepdims=True)
        return m + jnp.log(jnp.sum(jnp.exp(x - m), axis=-1, keepdims=True))

    def lse_cols(x):  # (B,N) -> (1,N)
        m = jnp.max(x, axis=0, keepdims=True)
        return m + jnp.log(jnp.sum(jnp.exp(x - m), axis=0, keepdims=True))

    def rowdot(a, b):  # diag(A @ B.T) computed straight from the vectors -> (B,1)
        return jnp.sum(a * b, axis=-1, keepdims=True)

    def ce_row(lg, diag):   # cross_entropy(lg, arange(B))
        return jnp.mean(lse_rows(lg) - diag)

    def ce_col(lg, diag):   # cross_entropy(lg.T, arange(B)) without materializing lg.T
        return jnp.mean(lse_cols(lg)) - jnp.mean(diag)

    not_eye = (jax.lax.broadcasted_iota(jnp.int32, (B, B), 0)
               != jax.lax.broadcasted_iota(jnp.int32, (B, B), 1)).astype(f32)

    # ---------------- weight-independent losses (weight DMA still in flight) --------
    img_n = l2norm(img_ref[...])
    climg_n = l2norm(climg_ref[...])
    # Fold 1/temperature into the shared RHS operands once (O(B*E) instead of O(B^2)).
    idtxt_s = l2norm(idtxt_ref[...]) * inv_t
    cltxt_s = l2norm(cltxt_ref[...]) * inv_t

    lhs_pre = jnp.concatenate([img_n, climg_n], axis=0)        # (2B, E)
    rhs_sh = jnp.concatenate([idtxt_s, cltxt_s], axis=0)       # (2B, E)   shared RHS
    s_pre = dot_t(lhs_pre, rhs_sh)                             # one MXU push -> (2B, 2B)
    nce = s_pre[0:B, 0:B]                                      # img      vs id_text
    m_lg = s_pre[B:2 * B, B:2 * B]                             # cloth_im vs cloth_text
    nce_d = rowdot(img_n, idtxt_s)
    m_d = rowdot(climg_n, cltxt_s)
    info_nce = 0.5 * (ce_row(nce, nce_d) + ce_col(nce, nce_d))
    cloth_match = 0.5 * (ce_row(m_lg, m_d) + ce_col(m_lg, m_d))

    # cls: CE(id_logits, pids) via an exact int32 one-hot (no float pid packing).
    logits = logits_ref[...]
    onehot = (jax.lax.broadcasted_iota(jnp.int32, (B, C), 1)
              == pids_ref[...]).astype(f32)
    picked = jnp.sum(logits * onehot, axis=-1, keepdims=True)
    cls = jnp.mean(lse_rows(logits) - picked)

    gate_reg = jnp.mean((gate_ref[...] - 0.5) ** 2)
    fgate_reg = jnp.mean((fgate_ref[...] - 0.5) ** 2)

    # ---------------- weight-dependent losses ----------------------------------------
    w_copy.wait()
    emb768 = jnp.concatenate([id768_ref[...], cl768_ref[...]], axis=0)   # (2B, 768)
    # One fused projection: bf16 x bf16 -> f32 accumulation (MXU-native on v5e/v6e/v7x).
    proj = jnp.dot(emb768.astype(jnp.bfloat16), w_vmem[...],
                   preferred_element_type=f32)                           # (2B, 2E)
    id_proj_n = l2norm(proj[0:B, 0:E] + b_ref[0:1, :])
    cl_proj_n = l2norm(proj[B:2 * B, E:2 * E] + b_ref[1:2, :])

    lhs_post = jnp.concatenate([id_proj_n, cl_proj_n], axis=0)           # (2B, E)
    s_post = dot_t(lhs_post, rhs_sh)                                     # (2B, 2B)
    bio_lg = s_post[0:B, 0:B]                                            # id_proj vs id_text
    cl_lg = s_post[B:2 * B, B:2 * B]                                     # cl_proj vs cloth_text
    bio = ce_row(bio_lg, rowdot(id_proj_n, idtxt_s))
    cloth = ce_row(cl_lg, rowdot(cl_proj_n, cltxt_s))

    neg = cl_lg * not_eye                        # logits - diag(diagonal(logits))
    cloth_adv = jnp.mean(lse_rows(neg) - neg)    # -mean(log_softmax); epoch=None

    gram = dot_t(lhs_post, lhs_post)                                     # (2B, 2B) self-gram
    id_k = gram[0:B, 0:B] * not_eye
    cl_k = gram[B:2 * B, B:2 * B] * not_eye
    decouple = jnp.mean(id_k * cl_k) / (B - 1)

    vals = (info_nce, cls, bio, cloth, cloth_adv, cloth_match, decouple,
            gate_reg, fgate_reg)
    total = sum(WEIGHTS[k] * v for k, v in zip(LOSS_ORDER, vals))

    # scalar writes straight into the SMEM output (no concatenate epilogue)
    for i, v in enumerate(vals):
        out_ref[0, i] = v
    out_ref[0, len(vals)] = total


# ---------------------------------------------------------------------------
# Wrapper. Projector params arrive PRE-PACKED (done once at setup, not per call):
#   w_pack_bf16 : (768, 512) bf16  = concat([W_id.T, W_cl.T], axis=1)
#   b_pack      : (2, 256)   f32   = stack([b_id, b_cl])
# ---------------------------------------------------------------------------
@jax.jit
def advanced_loss(image_embeds, id_text_embeds, id_logits, pids, id_embeds,
                  cloth_embeds, cloth_text_embeds, cloth_image_embeds,
                  gate, fusion_gate, w_pack_bf16, b_pack):
    f32 = jnp.float32
    B = image_embeds.shape[0]
    E = image_embeds.shape[1]
    FIN = id_embeds.shape[1]
    C = id_logits.shape[1]
    G, FG = gate.shape[1], fusion_gate.shape[1]
    two_b = 2 * B

    # --- VMEM residency estimate (gridless, everything-resident design) --------------
    live_f32 = (
        # VMEM-resident inputs
        4 * B * E + 2 * B * FIN + B * C + B + B * G + B * FG + 2 * E
        # normalized / scaled 256-d embeds + (2B, E) stacks (pre, shared RHS, post)
        + 7 * B * E + 3 * two_b * E
        # (2B, 768) activation stack + fused (2B, 2E) projection output
        + two_b * FIN + two_b * 2 * E
        # three (2B,2B) similarity/gram matrices, sliced BxB blocks, masks, exp/onehot
        + 3 * two_b * two_b + 12 * B * B + 2 * B * C
    )
    resident_bytes = 4 * live_f32 + 2 * (FIN * 2 * E) + 2 * (two_b * FIN)  # + bf16 buffers
    # Keep under v5e's 16 MiB scoped-VMEM default (v6e/v7x default 32 MiB).
    assert resident_bytes < 12 * 1024 * 1024, (
        "batch too large for the grid-less AdvancedLoss kernel")
    # TODO(synk): for large B, switch to a batch-block grid (online row-LSE for the CE
    # terms, tiled decouple accumulation), sized for v7x's 64 MiB VMEM and with the batch
    # axis marked "parallel" so both v7x TensorCores are used.
    vmem_limit = int(min(60 * 1024 * 1024, max(2 * resident_bytes, 16 * 1024 * 1024)))

    n_out = len(LOSS_ORDER) + 1
    vmem = pl.BlockSpec(memory_space=pltpu.MemorySpace.VMEM)
    smem = pl.BlockSpec(memory_space=pltpu.MemorySpace.SMEM)
    anyspace = pl.BlockSpec(memory_space=pl.ANY)      # weights: manual DMA inside kernel

    out = pl.pallas_call(
        advanced_loss_kernel,
        out_shape=jax.ShapeDtypeStruct((1, n_out), f32),
        in_specs=[vmem] * 11 + [anyspace],
        out_specs=smem,
        scratch_shapes=[pltpu.VMEM(w_pack_bf16.shape, jnp.bfloat16),
                        pltpu.SemaphoreType.DMA],
        compiler_params=pltpu.CompilerParams(vmem_limit_bytes=vmem_limit),
    )(image_embeds.astype(f32), id_text_embeds.astype(f32),
      cloth_text_embeds.astype(f32), cloth_image_embeds.astype(f32),
      id_embeds.astype(f32), cloth_embeds.astype(f32),
      id_logits.astype(f32), pids.astype(jnp.int32).reshape(B, 1),
      gate.astype(f32), fusion_gate.astype(f32),
      b_pack.astype(f32), w_pack_bf16)

    losses = {k: out[0, i] for i, k in enumerate(LOSS_ORDER)}
    losses["total"] = out[0, len(LOSS_ORDER)]
    return losses


# ---------------------------------------------------------------------------
# Pure-JAX reference (mirror of the PyTorch forward) for correctness checks.
# ---------------------------------------------------------------------------
def ref_advanced_loss(image_embeds, id_text_embeds, id_logits, pids, id_embeds,
                      cloth_embeds, cloth_text_embeds, cloth_image_embeds,
                      gate, fusion_gate, w_id_t, b_id, w_cl_t, b_cl):
    def norm(x):
        return x / jnp.maximum(jnp.linalg.norm(x, axis=-1, keepdims=True), EPS)

    def ce(lg, labels):
        lse = jax.scipy.special.logsumexp(lg, axis=-1)
        picked = jnp.take_along_axis(lg, labels[:, None], axis=-1)[:, 0]
        return jnp.mean(lse - picked)

    B = image_embeds.shape[0]
    labels = jnp.arange(B)
    losses = {}

    li, lt = norm(image_embeds), norm(id_text_embeds)
    lg = li @ lt.T / TEMPERATURE
    losses["info_nce"] = (ce(lg, labels) + ce(lg.T, labels)) / 2
    losses["cls"] = ce(id_logits, pids)

    idp = norm(id_embeds @ w_id_t + b_id)
    losses["bio"] = ce(idp @ lt.T / TEMPERATURE, labels)

    clp = norm(cloth_embeds @ w_cl_t + b_cl)
    ctn = norm(cloth_text_embeds)
    clg = clp @ ctn.T / TEMPERATURE
    losses["cloth"] = ce(clg, labels)
    neg = clg - jnp.diag(jnp.diagonal(clg))
    losses["cloth_adv"] = -jnp.mean(jax.nn.log_softmax(neg, axis=1))

    cin = norm(cloth_image_embeds)
    mg = cin @ ctn.T / TEMPERATURE
    losses["cloth_match"] = (ce(mg, labels) + ce(mg.T, labels)) / 2

    kid = idp @ idp.T
    kcl = clp @ clp.T
    kid = kid - jnp.diag(jnp.diagonal(kid))
    kcl = kcl - jnp.diag(jnp.diagonal(kcl))
    losses["decouple"] = jnp.mean(kid * kcl) / (B - 1)

    losses["gate_regularization"] = jnp.mean((gate - 0.5) ** 2)
    losses["fusion_gate_regularization"] = jnp.mean((fusion_gate - 0.5) ** 2)
    losses["total"] = sum(WEIGHTS[k] * losses[k] for k in WEIGHTS)
    return losses


if __name__ == "__main__":
    B, E, FIN, C, G = 8, 256, 768, 16, 4

    key = jax.random.PRNGKey(0)
    ks = jax.random.split(key, 14)

    image_embeds = jax.random.normal(ks[0], (B, E), jnp.float32)
    id_text_embeds = jax.random.normal(ks[1], (B, E), jnp.float32)
    id_logits = jax.random.normal(ks[2], (B, C), jnp.float32)
    pids = jax.random.randint(ks[3], (B,), 0, C, jnp.int32)
    id_embeds = jax.random.normal(ks[4], (B, FIN), jnp.float32)
    cloth_embeds = jax.random.normal(ks[5], (B, FIN), jnp.float32)
    cloth_text_embeds = jax.random.normal(ks[6], (B, E), jnp.float32)
    cloth_image_embeds = jax.random.normal(ks[7], (B, E), jnp.float32)
    gate = jax.nn.sigmoid(jax.random.normal(ks[8], (B, G), jnp.float32))
    fusion_gate = jax.nn.sigmoid(jax.random.normal(ks[9], (B, G), jnp.float32))

    # Projector params (nn.Linear default init style), pre-transposed [in, out].
    bound = 1.0 / float(jnp.sqrt(jnp.float32(FIN)))
    w_id_t = jax.random.uniform(ks[10], (FIN, E), jnp.float32, -bound, bound)
    b_id = jax.random.uniform(ks[11], (E,), jnp.float32, -bound, bound)
    w_cl_t = jax.random.uniform(ks[12], (FIN, E), jnp.float32, -bound, bound)
    b_cl = jax.random.uniform(ks[13], (E,), jnp.float32, -bound, bound)

    # One-time parameter packing (hoisted out of the per-step path per the perf review).
    w_pack_bf16 = jnp.concatenate([w_id_t, w_cl_t], axis=1).astype(jnp.bfloat16)  # (768,512)
    b_pack = jnp.stack([b_id, b_cl], axis=0)                                      # (2,256)

    out = advanced_loss(image_embeds, id_text_embeds, id_logits, pids, id_embeds,
                        cloth_embeds, cloth_text_embeds, cloth_image_embeds,
                        gate, fusion_gate, w_pack_bf16, b_pack)
    jax.block_until_ready(out["total"])

    keys = list(LOSS_ORDER) + ["total"]

    # Check 1: against the exact f32 module semantics. The only approximation on the
    # kernel path is the deliberate bf16 feed of the projector weights AND the 768-dim
    # activations (perf review item), so allow 5e-3.
    ref = ref_advanced_loss(image_embeds, id_text_embeds, id_logits, pids, id_embeds,
                            cloth_embeds, cloth_text_embeds, cloth_image_embeds,
                            gate, fusion_gate, w_id_t, b_id, w_cl_t, b_cl)
    for k in keys:
        a, b = float(out[k]), float(ref[k])
        assert abs(a - b) <= 5e-3 + 5e-3 * abs(b), f"mismatch vs f32 ref in {k}: {a} vs {b}"

    # Check 2: the kernel math itself — compare against the reference fed the same
    # bf16-rounded weights and 768-dim embeds (isolates the quantization decision).
    rnd = lambda x: x.astype(jnp.bfloat16).astype(jnp.float32)
    ref2 = ref_advanced_loss(image_embeds, id_text_embeds, id_logits, pids,
                             rnd(id_embeds), rnd(cloth_embeds),
                             cloth_text_embeds, cloth_image_embeds,
                             gate, fusion_gate, rnd(w_id_t), b_id, rnd(w_cl_t), b_cl)
    for k in keys:
        a, b = float(out[k]), float(ref2[k])
        assert abs(a - b) <= 1e-3 + 1e-3 * abs(b), f"mismatch vs bf16-fed ref in {k}: {a} vs {b}"

    print("KERNEL_OK")
</pallas_src>

<mosaic_0001>
module attributes {stable_mosaic.version = 11 : i64} {
  func.func @advanced_loss_kernel(%arg0: memref<8x256xf32, #tpu.memory_space<vmem>>, %arg1: memref<8x256xf32, #tpu.memory_space<vmem>>, %arg2: memref<8x256xf32, #tpu.memory_space<vmem>>, %arg3: memref<8x256xf32, #tpu.memory_space<vmem>>, %arg4: memref<8x768xf32, #tpu.memory_space<vmem>>, %arg5: memref<8x768xf32, #tpu.memory_space<vmem>>, %arg6: memref<8x16xf32, #tpu.memory_space<vmem>>, %arg7: memref<8x1xi32, #tpu.memory_space<vmem>>, %arg8: memref<8x4xf32, #tpu.memory_space<vmem>>, %arg9: memref<8x4xf32, #tpu.memory_space<vmem>>, %arg10: memref<2x256xf32, #tpu.memory_space<vmem>>, %arg11: memref<768x512xbf16, #tpu.memory_space<any>>, %arg12: memref<1x10xf32, #tpu.memory_space<smem>>, %arg13: memref<768x512xbf16, #tpu.memory_space<vmem>>, %arg14: memref<!tpu.dma_semaphore, #tpu.memory_space<semaphore_mem>>) attributes {dimension_semantics = [], scalar_prefetch = 0 : i64, scratch_operands = 2 : i64, tpu.core_type = #tpu.core_type<tc>} {
    tpu.enqueue_dma source(%arg11 : memref<768x512xbf16, #tpu.memory_space<any>>) target(%arg13 : memref<768x512xbf16, #tpu.memory_space<vmem>>) target_semaphore(%arg14 : memref<!tpu.dma_semaphore, #tpu.memory_space<semaphore_mem>>)
    %0 = tpu.iota {dimensions = array<i32: 0>} : vector<8x8xi32>
    %1 = tpu.iota {dimensions = array<i32: 1>} : vector<8x8xi32>
    %2 = arith.cmpi ne, %0, %1 : vector<8x8xi32>
    %3 = arith.extui %2 : vector<8x8xi1> to vector<8x8xi32>
    %4 = arith.sitofp %3 : vector<8x8xi32> to vector<8x8xf32>
    %c0 = arith.constant 0 : index
    %c0_0 = arith.constant 0 : index
    %5 = vector.load %arg0[%c0, %c0_0] : memref<8x256xf32, #tpu.memory_space<vmem>>, vector<8x256xf32>
    %6 = arith.mulf %5, %5 : vector<8x256xf32>
    %cst = arith.constant dense<0.000000e+00> : vector<8xf32>
    %7 = vector.multi_reduction <add>, %6, %cst [1] : vector<8x256xf32> to vector<8xf32>
    %8 = vector.shape_cast %7 : vector<8xf32> to vector<8x1xf32>
    %cst_1 = arith.constant 1.000000e-24 : f32
    %9 = vector.broadcast %cst_1 : f32 to vector<8x1xf32>
    %10 = arith.maximumf %8, %9 : vector<8x1xf32>
    %11 = math.rsqrt %10 : vector<8x1xf32>
    %12 = vector.broadcast %11 : vector<8x1xf32> to vector<8x256xf32>
    %13 = arith.mulf %5, %12 : vector<8x256xf32>
    %c0_2 = arith.constant 0 : index
    %c0_3 = arith.constant 0 : index
    %14 = vector.load %arg3[%c0_2, %c0_3] : memref<8x256xf32, #tpu.memory_space<vmem>>, vector<8x256xf32>
    %15 = arith.mulf %14, %14 : vector<8x256xf32>
    %cst_4 = arith.constant dense<0.000000e+00> : vector<8xf32>
    %16 = vector.multi_reduction <add>, %15, %cst_4 [1] : vector<8x256xf32> to vector<8xf32>
    %17 = vector.shape_cast %16 : vector<8xf32> to vector<8x1xf32>
    %cst_5 = arith.constant 1.000000e-24 : f32
    %18 = vector.broadcast %cst_5 : f32 to vector<8x1xf32>
    %19 = arith.maximumf %17, %18 : vector<8x1xf32>
    %20 = math.rsqrt %19 : vector<8x1xf32>
    %21 = vector.broadcast %20 : vector<8x1xf32> to vector<8x256xf32>
    %22 = arith.mulf %14, %21 : vector<8x256xf32>
    %c0_6 = arith.constant 0 : index
    %c0_7 = arith.constant 0 : index
    %23 = vector.load %arg1[%c0_6, %c0_7] : memref<8x256xf32, #tpu.memory_space<vmem>>, vector<8x256xf32>
    %24 = arith.mulf %23, %23 : vector<8x256xf32>
    %cst_8 = arith.constant dense<0.000000e+00> : vector<8xf32>
    %25 = vector.multi_reduction <add>, %24, %cst_8 [1] : vector<8x256xf32> to vector<8xf32>
    %26 = vector.shape_cast %25 : vector<8xf32> to vector<8x1xf32>
    %cst_9 = arith.constant 1.000000e-24 : f32
    %27 = vector.broadcast %cst_9 : f32 to vector<8x1xf32>
    %28 = arith.maximumf %26, %27 : vector<8x1xf32>
    %29 = math.rsqrt %28 : vector<8x1xf32>
    %30 = vector.broadcast %29 : vector<8x1xf32> to vector<8x256xf32>
    %31 = arith.mulf %23, %30 : vector<8x256xf32>
    %cst_10 = arith.constant 1.000000e+01 : f32
    %32 = vector.broadcast %cst_10 : f32 to vector<8x256xf32>
    %33 = arith.mulf %31, %32 : vector<8x256xf32>
    %c0_11 = arith.constant 0 : index
    %c0_12 = arith.constant 0 : index
    %34 = vector.load %arg2[%c0_11, %c0_12] : memref<8x256xf32, #tpu.memory_space<vmem>>, vector<8x256xf32>
    %35 = arith.mulf %34, %34 : vector<8x256xf32>
    %cst_13 = arith.constant dense<0.000000e+00> : vector<8xf32>
    %36 = vector.multi_reduction <add>, %35, %cst_13 [1] : vector<8x256xf32> to vector<8xf32>
    %37 = vector.shape_cast %36 : vector<8xf32> to vector<8x1xf32>
    %cst_14 = arith.constant 1.000000e-24 : f32
    %38 = vector.broadcast %cst_14 : f32 to vector<8x1xf32>
    %39 = arith.maximumf %37, %38 : vector<8x1xf32>
    %40 = math.rsqrt %39 : vector<8x1xf32>
    %41 = vector.broadcast %40 : vector<8x1xf32> to vector<8x256xf32>
    %42 = arith.mulf %34, %41 : vector<8x256xf32>
    %cst_15 = arith.constant 1.000000e+01 : f32
    %43 = vector.broadcast %cst_15 : f32 to vector<8x256xf32>
    %44 = arith.mulf %42, %43 : vector<8x256xf32>
    %45 = tpu.concatenate %13, %22 in 0 : vector<8x256xf32>, vector<8x256xf32> -> vector<16x256xf32>
    %46 = tpu.concatenate %33, %44 in 0 : vector<8x256xf32>, vector<8x256xf32> -> vector<16x256xf32>
    %cst_16 = arith.constant dense<0.000000e+00> : vector<16x16xf32>
    %47 = tpu.matmul %45, %46, %cst_16 {dimension_numbers = #tpu.dot_dimension_numbers<[1], [1], [0], [0], [0, 0, 1, 0], [], []>} : vector<16x256xf32>, vector<16x256xf32>, vector<16x16xf32> -> vector<16x16xf32>
    %48 = vector.extract_strided_slice %47 {offsets = [0, 0], sizes = [8, 8], strides = [1, 1]} : vector<16x16xf32> to vector<8x8xf32>
    %49 = vector.extract_strided_slice %47 {offsets = [8, 8], sizes = [8, 8], strides = [1, 1]} : vector<16x16xf32> to vector<8x8xf32>
    %50 = arith.mulf %13, %33 : vector<8x256xf32>
    %cst_17 = arith.constant dense<0.000000e+00> : vector<8xf32>
    %51 = vector.multi_reduction <add>, %50, %cst_17 [1] : vector<8x256xf32> to vector<8xf32>
    %52 = vector.shape_cast %51 : vector<8xf32> to vector<8x1xf32>
    %53 = arith.mulf %22, %44 : vector<8x256xf32>
    %cst_18 = arith.constant dense<0.000000e+00> : vector<8xf32>
    %54 = vector.multi_reduction <add>, %53, %cst_18 [1] : vector<8x256xf32> to vector<8xf32>
    %55 = vector.shape_cast %54 : vector<8xf32> to vector<8x1xf32>
    %cst_19 = arith.constant dense<0xFF800000> : vector<8xf32>
    %56 = vector.multi_reduction <maximumf>, %48, %cst_19 [1] : vector<8x8xf32> to vector<8xf32>
    %57 = vector.shape_cast %56 : vector<8xf32> to vector<8x1xf32>
    %58 = vector.broadcast %57 : vector<8x1xf32> to vector<8x8xf32>
    %59 = arith.subf %48, %58 : vector<8x8xf32>
    %60 = math.exp %59 : vector<8x8xf32>
    %cst_20 = arith.constant dense<0.000000e+00> : vector<8xf32>
    %61 = vector.multi_reduction <add>, %60, %cst_20 [1] : vector<8x8xf32> to vector<8xf32>
    %62 = vector.shape_cast %61 : vector<8xf32> to vector<8x1xf32>
    %63 = math.log %62 : vector<8x1xf32>
    %64 = arith.addf %57, %63 : vector<8x1xf32>
    %65 = arith.subf %64, %52 : vector<8x1xf32>
    %66 = vector.shape_cast %65 : vector<8x1xf32> to vector<1x8x1xf32>
    %cst_21 = arith.constant dense<0.000000e+00> : vector<1xf32>
    %67 = vector.multi_reduction <add>, %66, %cst_21 [1, 2] : vector<1x8x1xf32> to vector<1xf32>
    %68 = vector.shape_cast %67 : vector<1xf32> to vector<1x1x1xf32>
    %69 = vector.extract %68[0, 0, 0] : f32 from vector<1x1x1xf32>
    %cst_22 = arith.constant 8.000000e+00 : f32
    %70 = arith.divf %69, %cst_22 : f32
    %cst_23 = arith.constant dense<0xFF800000> : vector<8xf32>
    %71 = vector.multi_reduction <maximumf>, %48, %cst_23 [0] : vector<8x8xf32> to vector<8xf32>
    %72 = vector.shape_cast %71 : vector<8xf32> to vector<1x8xf32>
    %73 = vector.broadcast %72 : vector<1x8xf32> to vector<8x8xf32>
    %74 = arith.subf %48, %73 : vector<8x8xf32>
    %75 = math.exp %74 : vector<8x8xf32>
    %cst_24 = arith.constant dense<0.000000e+00> : vector<8xf32>
    %76 = vector.multi_reduction <add>, %75, %cst_24 [0] : vector<8x8xf32> to vector<8xf32>
    %77 = vector.shape_cast %76 : vector<8xf32> to vector<1x8xf32>
    %78 = math.log %77 : vector<1x8xf32>
    %79 = arith.addf %72, %78 : vector<1x8xf32>
    %80 = vector.shape_cast %79 : vector<1x8xf32> to vector<1x1x8xf32>
    %cst_25 = arith.constant dense<0.000000e+00> : vector<1xf32>
    %81 = vector.multi_reduction <add>, %80, %cst_25 [1, 2] : vector<1x1x8xf32> to vector<1xf32>
    %82 = vector.shape_cast %81 : vector<1xf32> to vector<1x1x1xf32>
    %83 = vector.extract %82[0, 0, 0] : f32 from vector<1x1x1xf32>
    %cst_26 = arith.constant 8.000000e+00 : f32
    %84 = arith.divf %83, %cst_26 : f32
    %85 = vector.shape_cast %52 : vector<8x1xf32> to vector<1x8x1xf32>
    %cst_27 = arith.constant dense<0.000000e+00> : vector<1xf32>
    %86 = vector.multi_reduction <add>, %85, %cst_27 [1, 2] : vector<1x8x1xf32> to vector<1xf32>
    %87 = vector.shape_cast %86 : vector<1xf32> to vector<1x1x1xf32>
    %88 = vector.extract %87[0, 0, 0] : f32 from vector<1x1x1xf32>
    %cst_28 = arith.constant 8.000000e+00 : f32
    %89 = arith.divf %88, %cst_28 : f32
    %90 = arith.subf %84, %89 : f32
    %91 = arith.addf %70, %90 : f32
    %cst_29 = arith.constant 5.000000e-01 : f32
    %92 = arith.mulf %cst_29, %91 : f32
    %cst_30 = arith.constant dense<0xFF800000> : vector<8xf32>
    %93 = vector.multi_reduction <maximumf>, %49, %cst_30 [1] : vector<8x8xf32> to vector<8xf32>
    %94 = vector.shape_cast %93 : vector<8xf32> to vector<8x1xf32>
    %95 = vector.broadcast %94 : vector<8x1xf32> to vector<8x8xf32>
    %96 = arith.subf %49, %95 : vector<8x8xf32>
    %97 = math.exp %96 : vector<8x8xf32>
    %cst_31 = arith.constant dense<0.000000e+00> : vector<8xf32>
    %98 = vector.multi_reduction <add>, %97, %cst_31 [1] : vector<8x8xf32> to vector<8xf32>
    %99 = vector.shape_cast %98 : vector<8xf32> to vector<8x1xf32>
    %100 = math.log %99 : vector<8x1xf32>
    %101 = arith.addf %94, %100 : vector<8x1xf32>
    %102 = arith.subf %101, %55 : vector<8x1xf32>
    %103 = vector.shape_cast %102 : vector<8x1xf32> to vector<1x8x1xf32>
    %cst_32 = arith.constant dense<0.000000e+00> : vector<1xf32>
    %104 = vector.multi_reduction <add>, %103, %cst_32 [1, 2] : vector<1x8x1xf32> to vector<1xf32>
    %105 = vector.shape_cast %104 : vector<1xf32> to vector<1x1x1xf32>
    %106 = vector.extract %105[0, 0, 0] : f32 from vector<1x1x1xf32>
    %cst_33 = arith.constant 8.000000e+00 : f32
    %107 = arith.divf %106, %cst_33 : f32
    %cst_34 = arith.constant dense<0xFF800000> : vector<8xf32>
    %108 = vector.multi_reduction <maximumf>, %49, %cst_34 [0] : vector<8x8xf32> to vector<8xf32>
    %109 = vector.shape_cast %108 : vector<8xf32> to vector<1x8xf32>
    %110 = vector.broadcast %109 : vector<1x8xf32> to vector<8x8xf32>
    %111 = arith.subf %49, %110 : vector<8x8xf32>
    %112 = math.exp %111 : vector<8x8xf32>
    %cst_35 = arith.constant dense<0.000000e+00> : vector<8xf32>
    %113 = vector.multi_reduction <add>, %112, %cst_35 [0] : vector<8x8xf32> to vector<8xf32>
    %114 = vector.shape_cast %113 : vector<8xf32> to vector<1x8xf32>
    %115 = math.log %114 : vector<1x8xf32>
    %116 = arith.addf %109, %115 : vector<1x8xf32>
    %117 = vector.shape_cast %116 : vector<1x8xf32> to vector<1x1x8xf32>
    %cst_36 = arith.constant dense<0.000000e+00> : vector<1xf32>
    %118 = vector.multi_reduction <add>, %117, %cst_36 [1, 2] : vector<1x1x8xf32> to vector<1xf32>
    %119 = vector.shape_cast %118 : vector<1xf32> to vector<1x1x1xf32>
    %120 = vector.extract %119[0, 0, 0] : f32 from vector<1x1x1xf32>
    %cst_37 = arith.constant 8.000000e+00 : f32
    %121 = arith.divf %120, %cst_37 : f32
    %122 = vector.shape_cast %55 : vector<8x1xf32> to vector<1x8x1xf32>
    %cst_38 = arith.constant dense<0.000000e+00> : vector<1xf32>
    %123 = vector.multi_reduction <add>, %122, %cst_38 [1, 2] : vector<1x8x1xf32> to vector<1xf32>
    %124 = vector.shape_cast %123 : vector<1xf32> to vector<1x1x1xf32>
    %125 = vector.extract %124[0, 0, 0] : f32 from vector<1x1x1xf32>
    %cst_39 = arith.constant 8.000000e+00 : f32
    %126 = arith.divf %125, %cst_39 : f32
    %127 = arith.subf %121, %126 : f32
    %128 = arith.addf %107, %127 : f32
    %cst_40 = arith.constant 5.000000e-01 : f32
    %129 = arith.mulf %cst_40, %128 : f32
    %c0_41 = arith.constant 0 : index
    %c0_42 = arith.constant 0 : index
    %130 = vector.load %arg6[%c0_41, %c0_42] : memref<8x16xf32, #tpu.memory_space<vmem>>, vector<8x16xf32>
    %131 = tpu.iota {dimensions = array<i32: 1>} : vector<8x16xi32>
    %c0_43 = arith.constant 0 : index
    %c0_44 = arith.constant 0 : index
    %132 = vector.load %arg7[%c0_43, %c0_44] : memref<8x1xi32, #tpu.memory_space<vmem>>, vector<8x1xi32>
    %133 = vector.broadcast %132 : vector<8x1xi32> to vector<8x16xi32>
    %134 = arith.cmpi eq, %131, %133 : vector<8x16xi32>
    %135 = arith.extui %134 : vector<8x16xi1> to vector<8x16xi32>
    %136 = arith.sitofp %135 : vector<8x16xi32> to vector<8x16xf32>
    %137 = arith.mulf %130, %136 : vector<8x16xf32>
    %cst_45 = arith.constant dense<0.000000e+00> : vector<8xf32>
    %138 = vector.multi_reduction <add>, %137, %cst_45 [1] : vector<8x16xf32> to vector<8xf32>
    %139 = vector.shape_cast %138 : vector<8xf32> to vector<8x1xf32>
    %cst_46 = arith.constant dense<0xFF800000> : vector<8xf32>
    %140 = vector.multi_reduction <maximumf>, %130, %cst_46 [1] : vector<8x16xf32> to vector<8xf32>
    %141 = vector.shape_cast %140 : vector<8xf32> to vector<8x1xf32>
    %142 = vector.broadcast %141 : vector<8x1xf32> to vector<8x16xf32>
    %143 = arith.subf %130, %142 : vector<8x16xf32>
    %144 = math.exp %143 : vector<8x16xf32>
    %cst_47 = arith.constant dense<0.000000e+00> : vector<8xf32>
    %145 = vector.multi_reduction <add>, %144, %cst_47 [1] : vector<8x16xf32> to vector<8xf32>
    %146 = vector.shape_cast %145 : vector<8xf32> to vector<8x1xf32>
    %147 = math.log %146 : vector<8x1xf32>
    %148 = arith.addf %141, %147 : vector<8x1xf32>
    %149 = arith.subf %148, %139 : vector<8x1xf32>
    %150 = vector.shape_cast %149 : vector<8x1xf32> to vector<1x8x1xf32>
    %cst_48 = arith.constant dense<0.000000e+00> : vector<1xf32>
    %151 = vector.multi_reduction <add>, %150, %cst_48 [1, 2] : vector<1x8x1xf32> to vector<1xf32>
    %152 = vector.shape_cast %151 : vector<1xf32> to vector<1x1x1xf32>
    %153 = vector.extract %152[0, 0, 0] : f32 from vector<1x1x1xf32>
    %cst_49 = arith.constant 8.000000e+00 : f32
    %154 = arith.divf %153, %cst_49 : f32
    %c0_50 = arith.constant 0 : index
    %c0_51 = arith.constant 0 : index
    %155 = vector.load %arg8[%c0_50, %c0_51] : memref<8x4xf32, #tpu.memory_space<vmem>>, vector<8x4xf32>
    %cst_52 = arith.constant 5.000000e-01 : f32
    %156 = vector.broadcast %cst_52 : f32 to vector<8x4xf32>
    %157 = arith.subf %155, %156 : vector<8x4xf32>
    %158 = arith.mulf %157, %157 : vector<8x4xf32>
    %159 = vector.shape_cast %158 : vector<8x4xf32> to vector<1x8x4xf32>
    %cst_53 = arith.constant dense<0.000000e+00> : vector<1xf32>
    %160 = vector.multi_reduction <add>, %159, %cst_53 [1, 2] : vector<1x8x4xf32> to vector<1xf32>
    %161 = vector.shape_cast %160 : vector<1xf32> to vector<1x1x1xf32>
    %162 = vector.extract %161[0, 0, 0] : f32 from vector<1x1x1xf32>
    %cst_54 = arith.constant 3.200000e+01 : f32
    %163 = arith.divf %162, %cst_54 : f32
    %c0_55 = arith.constant 0 : index
    %c0_56 = arith.constant 0 : index
    %164 = vector.load %arg9[%c0_55, %c0_56] : memref<8x4xf32, #tpu.memory_space<vmem>>, vector<8x4xf32>
    %cst_57 = arith.constant 5.000000e-01 : f32
    %165 = vector.broadcast %cst_57 : f32 to vector<8x4xf32>
    %166 = arith.subf %164, %165 : vector<8x4xf32>
    %167 = arith.mulf %166, %166 : vector<8x4xf32>
    %168 = vector.shape_cast %167 : vector<8x4xf32> to vector<1x8x4xf32>
    %cst_58 = arith.constant dense<0.000000e+00> : vector<1xf32>
    %169 = vector.multi_reduction <add>, %168, %cst_58 [1, 2] : vector<1x8x4xf32> to vector<1xf32>
    %170 = vector.shape_cast %169 : vector<1xf32> to vector<1x1x1xf32>
    %171 = vector.extract %170[0, 0, 0] : f32 from vector<1x1x1xf32>
    %cst_59 = arith.constant 3.200000e+01 : f32
    %172 = arith.divf %171, %cst_59 : f32
    tpu.wait_dma2 semaphore(%arg14 : memref<!tpu.dma_semaphore, #tpu.memory_space<semaphore_mem>>) src(%arg11 : memref<768x512xbf16, #tpu.memory_space<any>>) dst(%arg13 : memref<768x512xbf16, #tpu.memory_space<vmem>>)
    %c0_60 = arith.constant 0 : index
    %c0_61 = arith.constant 0 : index
    %173 = vector.load %arg4[%c0_60, %c0_61] : memref<8x768xf32, #tpu.memory_space<vmem>>, vector<8x768xf32>
    %c0_62 = arith.constant 0 : index
    %c0_63 = arith.constant 0 : index
    %174 = vector.load %arg5[%c0_62, %c0_63] : memref<8x768xf32, #tpu.memory_space<vmem>>, vector<8x768xf32>
    %175 = tpu.concatenate %173, %174 in 0 : vector<8x768xf32>, vector<8x768xf32> -> vector<16x768xf32>
    %176 = arith.truncf %175 : vector<16x768xf32> to vector<16x768xbf16>
    %c0_64 = arith.constant 0 : index
    %c0_65 = arith.constant 0 : index
    %177 = vector.load %arg13[%c0_64, %c0_65] : memref<768x512xbf16, #tpu.memory_space<vmem>>, vector<768x512xbf16>
    %cst_66 = arith.constant dense<0.000000e+00> : vector<16x512xf32>
    %178 = tpu.matmul %176, %177, %cst_66 {dimension_numbers = #tpu.dot_dimension_numbers<[1], [0], [0], [1], [0, 0, 1, 1], [], []>} : vector<16x768xbf16>, vector<768x512xbf16>, vector<16x512xf32> -> vector<16x512xf32>
    %179 = vector.extract_strided_slice %178 {offsets = [0, 0], sizes = [8, 256], strides = [1, 1]} : vector<16x512xf32> to vector<8x256xf32>
    %c0_67 = arith.constant 0 : index
    %c0_68 = arith.constant 0 : index
    %180 = vector.load %arg10[%c0_67, %c0_68] : memref<2x256xf32, #tpu.memory_space<vmem>>, vector<1x256xf32>
    %181 = vector.broadcast %180 : vector<1x256xf32> to vector<8x256xf32>
    %182 = arith.addf %179, %181 : vector<8x256xf32>
    %183 = arith.mulf %182, %182 : vector<8x256xf32>
    %cst_69 = arith.constant dense<0.000000e+00> : vector<8xf32>
    %184 = vector.multi_reduction <add>, %183, %cst_69 [1] : vector<8x256xf32> to vector<8xf32>
    %185 = vector.shape_cast %184 : vector<8xf32> to vector<8x1xf32>
    %cst_70 = arith.constant 1.000000e-24 : f32
    %186 = vector.broadcast %cst_70 : f32 to vector<8x1xf32>
    %187 = arith.maximumf %185, %186 : vector<8x1xf32>
    %188 = math.rsqrt %187 : vector<8x1xf32>
    %189 = vector.broadcast %188 : vector<8x1xf32> to vector<8x256xf32>
    %190 = arith.mulf %182, %189 : vector<8x256xf32>
    %191 = vector.extract_strided_slice %178 {offsets = [8, 256], sizes = [8, 256], strides = [1, 1]} : vector<16x512xf32> to vector<8x256xf32>
    %c1 = arith.constant 1 : index
    %c0_71 = arith.constant 0 : index
    %192 = vector.load %arg10[%c1, %c0_71] : memref<2x256xf32, #tpu.memory_space<vmem>>, vector<1x256xf32>
    %193 = vector.broadcast %192 : vector<1x256xf32> to vector<8x256xf32>
    %194 = arith.addf %191, %193 : vector<8x256xf32>
    %195 = arith.mulf %194, %194 : vector<8x256xf32>
    %cst_72 = arith.constant dense<0.000000e+00> : vector<8xf32>
    %196 = vector.multi_reduction <add>, %195, %cst_72 [1] : vector<8x256xf32> to vector<8xf32>
    %197 = vector.shape_cast %196 : vector<8xf32> to vector<8x1xf32>
    %cst_73 = arith.constant 1.000000e-24 : f32
    %198 = vector.broadcast %cst_73 : f32 to vector<8x1xf32>
    %199 = arith.maximumf %197, %198 : vector<8x1xf32>
    %200 = math.rsqrt %199 : vector<8x1xf32>
    %201 = vector.broadcast %200 : vector<8x1xf32> to vector<8x256xf32>
    %202 = arith.mulf %194, %201 : vector<8x256xf32>
    %203 = tpu.concatenate %190, %202 in 0 : vector<8x256xf32>, vector<8x256xf32> -> vector<16x256xf32>
    %cst_74 = arith.constant dense<0.000000e+00> : vector<16x16xf32>
    %204 = tpu.matmul %203, %46, %cst_74 {dimension_numbers = #tpu.dot_dimension_numbers<[1], [1], [0], [0], [0, 0, 1, 0], [], []>} : vector<16x256xf32>, vector<16x256xf32>, vector<16x16xf32> -> vector<16x16xf32>
    %205 = vector.extract_strided_slice %204 {offsets = [0, 0], sizes = [8, 8], strides = [1, 1]} : vector<16x16xf32> to vector<8x8xf32>
    %206 = vector.extract_strided_slice %204 {offsets = [8, 8], sizes = [8, 8], strides = [1, 1]} : vector<16x16xf32> to vector<8x8xf32>
    %207 = arith.mulf %190, %33 : vector<8x256xf32>
    %cst_75 = arith.constant dense<0.000000e+00> : vector<8xf32>
    %208 = vector.multi_reduction <add>, %207, %cst_75 [1] : vector<8x256xf32> to vector<8xf32>
    %209 = vector.shape_cast %208 : vector<8xf32> to vector<8x1xf32>
    %cst_76 = arith.constant dense<0xFF800000> : vector<8xf32>
    %210 = vector.multi_reduction <maximumf>, %205, %cst_76 [1] : vector<8x8xf32> to vector<8xf32>
    %211 = vector.shape_cast %210 : vector<8xf32> to vector<8x1xf32>
    %212 = vector.broadcast %211 : vector<8x1xf32> to vector<8x8xf32>
    %213 = arith.subf %205, %212 : vector<8x8xf32>
    %214 = math.exp %213 : vector<8x8xf32>
    %cst_77 = arith.constant dense<0.000000e+00> : vector<8xf32>
    %215 = vector.multi_reduction <add>, %214, %cst_77 [1] : vector<8x8xf32> to vector<8xf32>
    %216 = vector.shape_cast %215 : vector<8xf32> to vector<8x1xf32>
    %217 = math.log %216 : vector<8x1xf32>
    %218 = arith.addf %211, %217 : vector<8x1xf32>
    %219 = arith.subf %218, %209 : vector<8x1xf32>
    %220 = vector.shape_cast %219 : vector<8x1xf32> to vector<1x8x1xf32>
    %cst_78 = arith.constant dense<0.000000e+00> : vector<1xf32>
    %221 = vector.multi_reduction <add>, %220, %cst_78 [1, 2] : vector<1x8x1xf32> to vector<1xf32>
    %222 = vector.shape_cast %221 : vector<1xf32> to vector<1x1x1xf32>
    %223 = vector.extract %222[0, 0, 0] : f32 from vector<1x1x1xf32>
    %cst_79 = arith.constant 8.000000e+00 : f32
    %224 = arith.divf %223, %cst_79 : f32
    %225 = arith.mulf %202, %44 : vector<8x256xf32>
    %cst_80 = arith.constant dense<0.000000e+00> : vector<8xf32>
    %226 = vector.multi_reduction <add>, %225, %cst_80 [1] : vector<8x256xf32> to vector<8xf32>
    %227 = vector.shape_cast %226 : vector<8xf32> to vector<8x1xf32>
    %cst_81 = arith.constant dense<0xFF800000> : vector<8xf32>
    %228 = vector.multi_reduction <maximumf>, %206, %cst_81 [1] : vector<8x8xf32> to vector<8xf32>
    %229 = vector.shape_cast %228 : vector<8xf32> to vector<8x1xf32>
    %230 = vector.broadcast %229 : vector<8x1xf32> to vector<8x8xf32>
    %231 = arith.subf %206, %230 : vector<8x8xf32>
    %232 = math.exp %231 : vector<8x8xf32>
    %cst_82 = arith.constant dense<0.000000e+00> : vector<8xf32>
    %233 = vector.multi_reduction <add>, %232, %cst_82 [1] : vector<8x8xf32> to vector<8xf32>
    %234 = vector.shape_cast %233 : vector<8xf32> to vector<8x1xf32>
    %235 = math.log %234 : vector<8x1xf32>
    %236 = arith.addf %229, %235 : vector<8x1xf32>
    %237 = arith.subf %236, %227 : vector<8x1xf32>
    %238 = vector.shape_cast %237 : vector<8x1xf32> to vector<1x8x1xf32>
    %cst_83 = arith.constant dense<0.000000e+00> : vector<1xf32>
    %239 = vector.multi_reduction <add>, %238, %cst_83 [1, 2] : vector<1x8x1xf32> to vector<1xf32>
    %240 = vector.shape_cast %239 : vector<1xf32> to vector<1x1x1xf32>
    %241 = vector.extract %240[0, 0, 0] : f32 from vector<1x1x1xf32>
    %cst_84 = arith.constant 8.000000e+00 : f32
    %242 = arith.divf %241, %cst_84 : f32
    %243 = arith.mulf %206, %4 : vector<8x8xf32>
    %cst_85 = arith.constant dense<0xFF800000> : vector<8xf32>
    %244 = vector.multi_reduction <maximumf>, %243, %cst_85 [1] : vector<8x8xf32> to vector<8xf32>
    %245 = vector.shape_cast %244 : vector<8xf32> to vector<8x1xf32>
    %246 = vector.broadcast %245 : vector<8x1xf32> to vector<8x8xf32>
    %247 = arith.subf %243, %246 : vector<8x8xf32>
    %248 = math.exp %247 : vector<8x8xf32>
    %cst_86 = arith.constant dense<0.000000e+00> : vector<8xf32>
    %249 = vector.multi_reduction <add>, %248, %cst_86 [1] : vector<8x8xf32> to vector<8xf32>
    %250 = vector.shape_cast %249 : vector<8xf32> to vector<8x1xf32>
    %251 = math.log %250 : vector<8x1xf32>
    %252 = arith.addf %245, %251 : vector<8x1xf32>
    %253 = vector.broadcast %252 : vector<8x1xf32> to vector<8x8xf32>
    %254 = arith.subf %253, %243 : vector<8x8xf32>
    %255 = vector.shape_cast %254 : vector<8x8xf32> to vector<1x8x8xf32>
    %cst_87 = arith.constant dense<0.000000e+00> : vector<1xf32>
    %256 = vector.multi_reduction <add>, %255, %cst_87 [1, 2] : vector<1x8x8xf32> to vector<1xf32>
    %257 = vector.shape_cast %256 : vector<1xf32> to vector<1x1x1xf32>
    %258 = vector.extract %257[0, 0, 0] : f32 from vector<1x1x1xf32>
    %cst_88 = arith.constant 6.400000e+01 : f32
    %259 = arith.divf %258, %cst_88 : f32
    %cst_89 = arith.constant dense<0.000000e+00> : vector<16x16xf32>
    %260 = tpu.matmul %203, %203, %cst_89 {dimension_numbers = #tpu.dot_dimension_numbers<[1], [1], [0], [0], [0, 0, 1, 0], [], []>} : vector<16x256xf32>, vector<16x256xf32>, vector<16x16xf32> -> vector<16x16xf32>
    %261 = vector.extract_strided_slice %260 {offsets = [0, 0], sizes = [8, 8], strides = [1, 1]} : vector<16x16xf32> to vector<8x8xf32>
    %262 = arith.mulf %261, %4 : vector<8x8xf32>
    %263 = vector.extract_strided_slice %260 {offsets = [8, 8], sizes = [8, 8], strides = [1, 1]} : vector<16x16xf32> to vector<8x8xf32>
    %264 = arith.mulf %263, %4 : vector<8x8xf32>
    %265 = arith.mulf %262, %264 : vector<8x8xf32>
    %266 = vector.shape_cast %265 : vector<8x8xf32> to vector<1x8x8xf32>
    %cst_90 = arith.constant dense<0.000000e+00> : vector<1xf32>
    %267 = vector.multi_reduction <add>, %266, %cst_90 [1, 2] : vector<1x8x8xf32> to vector<1xf32>
    %268 = vector.shape_cast %267 : vector<1xf32> to vector<1x1x1xf32>
    %269 = vector.extract %268[0, 0, 0] : f32 from vector<1x1x1xf32>
    %cst_91 = arith.constant 6.400000e+01 : f32
    %270 = arith.divf %269, %cst_91 : f32
    %cst_92 = arith.constant 7.000000e+00 : f32
    %271 = arith.divf %270, %cst_92 : f32
    %cst_93 = arith.constant 1.000000e+00 : f32
    %272 = arith.mulf %cst_93, %92 : f32
    %cst_94 = arith.constant 0.000000e+00 : f32
    %273 = arith.addf %cst_94, %272 : f32
    %cst_95 = arith.constant 1.000000e+00 : f32
    %274 = arith.mulf %cst_95, %154 : f32
    %275 = arith.addf %273, %274 : f32
    %cst_96 = arith.constant 5.000000e-01 : f32
    %276 = arith.mulf %cst_96, %224 : f32
    %277 = arith.addf %275, %276 : f32
    %cst_97 = arith.constant 5.000000e-01 : f32
    %278 = arith.mulf %cst_97, %242 : f32
    %279 = arith.addf %277, %278 : f32
    %cst_98 = arith.constant 1.000000e-01 : f32
    %280 = arith.mulf %cst_98, %259 : f32
    %281 = arith.addf %279, %280 : f32
    %cst_99 = arith.constant 1.000000e+00 : f32
    %282 = arith.mulf %cst_99, %129 : f32
    %283 = arith.addf %281, %282 : f32
    %cst_100 = arith.constant 2.000000e-01 : f32
    %284 = arith.mulf %cst_100, %271 : f32
    %285 = arith.addf %283, %284 : f32
    %cst_101 = arith.constant 0.00999999977 : f32
    %286 = arith.mulf %cst_101, %163 : f32
    %287 = arith.addf %285, %286 : f32
    %cst_102 = arith.constant 0.00999999977 : f32
    %288 = arith.mulf %cst_102, %172 : f32
    %289 = arith.addf %287, %288 : f32
    %c0_103 = arith.constant 0 : index
    %c0_104 = arith.constant 0 : index
    %290 = memref.load %arg12[%c0_103, %c0_104] : memref<1x10xf32, #tpu.memory_space<smem>>
    memref.store %92, %arg12[%c0_103, %c0_104] : memref<1x10xf32, #tpu.memory_space<smem>>
    %c0_105 = arith.constant 0 : index
    %c1_106 = arith.constant 1 : index
    %291 = memref.load %arg12[%c0_105, %c1_106] : memref<1x10xf32, #tpu.memory_space<smem>>
    memref.store %154, %arg12[%c0_105, %c1_106] : memref<1x10xf32, #tpu.memory_space<smem>>
    %c0_107 = arith.constant 0 : index
    %c2 = arith.constant 2 : index
    %292 = memref.load %arg12[%c0_107, %c2] : memref<1x10xf32, #tpu.memory_space<smem>>
    memref.store %224, %arg12[%c0_107, %c2] : memref<1x10xf32, #tpu.memory_space<smem>>
    %c0_108 = arith.constant 0 : index
    %c3 = arith.constant 3 : index
    %293 = memref.load %arg12[%c0_108, %c3] : memref<1x10xf32, #tpu.memory_space<smem>>
    memref.store %242, %arg12[%c0_108, %c3] : memref<1x10xf32, #tpu.memory_space<smem>>
    %c0_109 = arith.constant 0 : index
    %c4 = arith.constant 4 : index
    %294 = memref.load %arg12[%c0_109, %c4] : memref<1x10xf32, #tpu.memory_space<smem>>
    memref.store %259, %arg12[%c0_109, %c4] : memref<1x10xf32, #tpu.memory_space<smem>>
    %c0_110 = arith.constant 0 : index
    %c5 = arith.constant 5 : index
    %295 = memref.load %arg12[%c0_110, %c5] : memref<1x10xf32, #tpu.memory_space<smem>>
    memref.store %129, %arg12[%c0_110, %c5] : memref<1x10xf32, #tpu.memory_space<smem>>
    %c0_111 = arith.constant 0 : index
    %c6 = arith.constant 6 : index
    %296 = memref.load %arg12[%c0_111, %c6] : memref<1x10xf32, #tpu.memory_space<smem>>
    memref.store %271, %arg12[%c0_111, %c6] : memref<1x10xf32, #tpu.memory_space<smem>>
    %c0_112 = arith.constant 0 : index
    %c7 = arith.constant 7 : index
    %297 = memref.load %arg12[%c0_112, %c7] : memref<1x10xf32, #tpu.memory_space<smem>>
    memref.store %163, %arg12[%c0_112, %c7] : memref<1x10xf32, #tpu.memory_space<smem>>
    %c0_113 = arith.constant 0 : index
    %c8 = arith.constant 8 : index
    %298 = memref.load %arg12[%c0_113, %c8] : memref<1x10xf32, #tpu.memory_space<smem>>
    memref.store %172, %arg12[%c0_113, %c8] : memref<1x10xf32, #tpu.memory_space<smem>>
    %c0_114 = arith.constant 0 : index
    %c9 = arith.constant 9 : index
    %299 = memref.load %arg12[%c0_114, %c9] : memref<1x10xf32, #tpu.memory_space<smem>>
    memref.store %289, %arg12[%c0_114, %c9] : memref<1x10xf32, #tpu.memory_space<smem>>
    return
  }
}

</mosaic_0001>

<llo_original>
// kernel: advanced_loss.1
$region0: #{advanced_loss.1}
  #allocation0 [shape = 'u32[]', space=smem, size = 0x4, offset = 0x4, fixed_abs, tag = 'smem constant byte address 0x4 - core index']
  #allocation1 [shape = 'u32[144,128]{1,0:T(1,128)}', space=vmem, size = 0x12000, scoped, tag = 'internal scratch']
  #allocation2 [shape = 'bf16[768,512]{1,0:T(16,128)(2,1)}', space=vmem, size = 0xc0000, scoped, tag = 'scratch operand']
  #allocation3 [shape = 's32[1]{0}', space=sflag, size = 0x4, scoped, tag = 'scratch operand']
  #allocation16 [shape = 's32[]', space=sflag, size = 0x4, offset = 0, fixed_abs, tag = 'sflag constant byte address 0x0 - dummy sync flag']
  %s0 = inlined_call_operand.hbm [shape: f32[8,256], index: 0, kind: input, shape index: {}]
  %s1 = inlined_call_operand.hbm [shape: f32[8,256], index: 1, kind: input, shape index: {}]
  %s2 = inlined_call_operand.hbm [shape: f32[8,256], index: 2, kind: input, shape index: {}]
  %s3 = inlined_call_operand.hbm [shape: f32[8,256], index: 3, kind: input, shape index: {}]
  %s4 = inlined_call_operand.vmem [shape: f32[8,768], index: 4, kind: input, shape index: {}]
  %s5 = inlined_call_operand.hbm [shape: f32[8,768], index: 5, kind: input, shape index: {}]
  %s6 = inlined_call_operand.hbm [shape: f32[8,16], index: 6, kind: input, shape index: {}]
  %s7 = inlined_call_operand.vmem [shape: s32[8,1], index: 7, kind: input, shape index: {}]
  %s8 = inlined_call_operand.vmem [shape: f32[8,4], index: 8, kind: input, shape index: {}]
  %s9 = inlined_call_operand.vmem [shape: f32[8,4], index: 9, kind: input, shape index: {}]
  %s10 = inlined_call_operand.vmem [shape: f32[2,256], index: 10, kind: input, shape index: {}]
  %s11 = inlined_call_operand.hbm [shape: bf16[768,512], index: 11, kind: input, shape index: {}]
  %s12 = inlined_call_operand.vmem [shape: f32[1,10], index: 12, kind: output, shape index: {}]
  %s13 = sld [smem:[#allocation0]]
  $region78: #{advanced_loss.1} parent=0
    _
  %s15 = ssub.s32 1, %s13
  %s16 = scalar_select 0, %s15, %s13
  $region1: #{advanced_loss.1} parent=0
    #allocation4 [shape = 'u8[8192]{0}', space=vmem, size = 0x2000, scoped, tag = 'input window, operand 0, single buffered']
    #allocation5 [shape = 's32[1]{0}', space=sflag, size = 0x4, scoped, tag = 'scoped memory for advanced_loss.1']
    #allocation6 [shape = 's32[1]{0}', space=sflag, size = 0x4, scoped, tag = 'scoped memory for advanced_loss.1']
    #allocation7 [shape = 'u8[8192]{0}', space=vmem, size = 0x2000, scoped, tag = 'input window, operand 1, single buffered']
    #allocation8 [shape = 's32[1]{0}', space=sflag, size = 0x4, scoped, tag = 'scoped memory for advanced_loss.1']
    #allocation9 [shape = 'u8[8192]{0}', space=vmem, size = 0x2000, scoped, tag = 'input window, operand 2, single buffered']
    #allocation10 [shape = 'u8[8192]{0}', space=vmem, size = 0x2000, scoped, tag = 'input window, operand 3, single buffered']
    #allocation11 [shape = 's32[1]{0}', space=sflag, size = 0x4, scoped, tag = 'scoped memory for advanced_loss.1']
    #allocation12 [shape = 'u8[24576]{0}', space=vmem, size = 0x6000, scoped, tag = 'input window, operand 5, single buffered']
    #allocation13 [shape = 'u8[4096]{0}', space=vmem, size = 0x1000, scoped, tag = 'input window, operand 6, single buffered']
    #allocation14 [shape = 's32[1]{0}', space=sflag, size = 0x4, scoped, tag = 'scoped memory for advanced_loss.1']
    #allocation15 [shape = 'u8[512]{0}', space=smem, size = 0x200, scoped, tag = 'output window, operand 0, single buffered']
    #allocation17 [shape = 'u32[9]{0}', space=smem, size = 0x24, scoped, tag = 'DMA stride descriptor']
    %17 = vsyncpa [#allocation5], 0
    %18 = vsyncpa [#allocation8], 0
    %19 = vsyncpa [#allocation11], 0
    %20 = vsyncpa [#allocation14], 0
    %21 = vsyncpa [#allocation6], 0
    // Predicated region
    $region2: #{advanced_loss.1} parent=1 // pred_check
      _
    $region3: #{advanced_loss.1} parent=1 // pred_check_branch
      %23 = sbr.rel (0) target = $region5
    $region4: #{advanced_loss.1} parent=1 // pred_region
      %s25 = ssub.s32 256, 256
      %26 = vsyncadd [#allocation5], %s25
      %s28 = sshll.u32 [#allocation4], 4
      %s29 = int_to_ptr.vmem [resolvable:$true] %s28
      %31 = dma.hbm_to_vmem [thread:$0]  %s0, 256, %s29, [#allocation5]
    $region5: #{advanced_loss.1} parent=1 // pred_fallthru
      _
    // Predicated region
    $region6: #{advanced_loss.1} parent=1 // pred_check
      _
    $region7: #{advanced_loss.1} parent=1 // pred_check_branch
      %33 = sbr.rel (0) target = $region9
    $region8: #{advanced_loss.1} parent=1 // pred_region
      %s35 = ssub.s32 256, 256
      %36 = vsyncadd [#allocation8], %s35
      %s38 = sshll.u32 [#allocation7], 4
      %s39 = int_to_ptr.vmem [resolvable:$true] %s38
      %41 = dma.hbm_to_vmem [thread:$0]  %s1, 256, %s39, [#allocation8]
    $region9: #{advanced_loss.1} parent=1 // pred_fallthru
      _
    // Predicated region
    $region10: #{advanced_loss.1} parent=1 // pred_check
      _
    $region11: #{advanced_loss.1} parent=1 // pred_check_branch
      %43 = sbr.rel (0) target = $region13
    $region12: #{advanced_loss.1} parent=1 // pred_region
      %s45 = ssub.s32 256, 256
      %46 = vsyncadd [#allocation8], %s45
      %s48 = sshll.u32 [#allocation9], 4
      %s49 = int_to_ptr.vmem [resolvable:$true] %s48
      %51 = dma.hbm_to_vmem [thread:$0]  %s2, 256, %s49, [#allocation8]
    $region13: #{advanced_loss.1} parent=1 // pred_fallthru
      _
    // Predicated region
    $region14: #{advanced_loss.1} parent=1 // pred_check
      _
    $region15: #{advanced_loss.1} parent=1 // pred_check_branch
      %53 = sbr.rel (0) target = $region17
    $region16: #{advanced_loss.1} parent=1 // pred_region
      %s55 = ssub.s32 256, 256
      %56 = vsyncadd [#allocation11], %s55
      %s58 = sshll.u32 [#allocation10], 4
      %s59 = int_to_ptr.vmem [resolvable:$true] %s58
      %61 = dma.hbm_to_vmem [thread:$0]  %s3, 256, %s59, [#allocation11]
    $region17: #{advanced_loss.1} parent=1 // pred_fallthru
      _
    // Predicated region
    $region18: #{advanced_loss.1} parent=1 // pred_check
      _
    $region19: #{advanced_loss.1} parent=1 // pred_check_branch
      %63 = sbr.rel (0) target = $region21
    $region20: #{advanced_loss.1} parent=1 // pred_region
      _
    $region21: #{advanced_loss.1} parent=1 // pred_fallthru
      _
    // Predicated region
    $region22: #{advanced_loss.1} parent=1 // pred_check
      _
    $region23: #{advanced_loss.1} parent=1 // pred_check_branch
      %65 = sbr.rel (0) target = $region25
    $region24: #{advanced_loss.1} parent=1 // pred_region
      %s67 = ssub.s32 768, 768
      %68 = vsyncadd [#allocation11], %s67
      %s70 = sshll.u32 [#allocation12], 4
      %s71 = int_to_ptr.vmem [resolvable:$true] %s70
      %73 = dma.hbm_to_vmem [thread:$0]  %s5, 768, %s71, [#allocation11]
    $region25: #{advanced_loss.1} parent=1 // pred_fallthru
      _
    // Predicated region
    $region26: #{advanced_loss.1} parent=1 // pred_check
      _
    $region27: #{advanced_loss.1} parent=1 // pred_check_branch
      %75 = sbr.rel (0) target = $region29
    $region28: #{advanced_loss.1} parent=1 // pred_region
      %s77 = ssub.s32 128, 128
      %78 = vsyncadd [#allocation14], %s77
      %s80 = sshll.u32 [#allocation13], 4
      %s81 = int_to_ptr.vmem [resolvable:$true] %s80
      %83 = dma.hbm_to_vmem [thread:$0]  %s6, 128, %s81, [#allocation14]
    $region29: #{advanced_loss.1} parent=1 // pred_fallthru
      _
    // Predicated region
    $region30: #{advanced_loss.1} parent=1 // pred_check
      _
    $region31: #{advanced_loss.1} parent=1 // pred_check_branch
      %85 = sbr.rel (0) target = $region33
    $region32: #{advanced_loss.1} parent=1 // pred_region
      _
    $region33: #{advanced_loss.1} parent=1 // pred_fallthru
      _
    // Predicated region
    $region34: #{advanced_loss.1} parent=1 // pred_check
      _
    $region35: #{advanced_loss.1} parent=1 // pred_check_branch
      %87 = sbr.rel (0) target = $region37
    $region36: #{advanced_loss.1} parent=1 // pred_region
      _
    $region37: #{advanced_loss.1} parent=1 // pred_fallthru
      _
    // Predicated region
    $region38: #{advanced_loss.1} parent=1 // pred_check
      _
    $region39: #{advanced_loss.1} parent=1 // pred_check_branch
      %89 = sbr.rel (0) target = $region41
    $region40: #{advanced_loss.1} parent=1 // pred_region
      _
    $region41: #{advanced_loss.1} parent=1 // pred_fallthru
      _
    // Predicated region
    $region42: #{advanced_loss.1} parent=1 // pred_check
      _
    $region43: #{advanced_loss.1} parent=1 // pred_check_branch
      %91 = sbr.rel (0) target = $region45
    $region44: #{advanced_loss.1} parent=1 // pred_region
      _
    $region45: #{advanced_loss.1} parent=1 // pred_fallthru
      _
    // Predicated region
    $region46: #{advanced_loss.1} parent=1 // pred_check
      _
    $region47: #{advanced_loss.1} parent=1 // pred_check_branch
      %93 = sbr.rel (0) target = $region49
    $region48: #{advanced_loss.1} parent=1 // pred_region
      %94 = dma.done [#allocation5], 256
    $region49: #{advanced_loss.1} parent=1 // pred_fallthru
      _
    // Predicated region
    $region50: #{advanced_loss.1} parent=1 // pred_check
      _
    $region51: #{advanced_loss.1} parent=1 // pred_check_branch
      %96 = sbr.rel (0) target = $region53
    $region52: #{advanced_loss.1} parent=1 // pred_region
      %97 = dma.done [#allocation8], 256
    $region53: #{advanced_loss.1} parent=1 // pred_fallthru
      _
    // Predicated region
    $region54: #{advanced_loss.1} parent=1 // pred_check
      _
    $region55: #{advanced_loss.1} parent=1 // pred_check_branch
      %99 = sbr.rel (0) target = $region57
    $region56: #{advanced_loss.1} parent=1 // pred_region
      %100 = dma.done [#allocation8], 256
    $region57: #{advanced_loss.1} parent=1 // pred_fallthru
      _
    // Predicated region
    $region58: #{advanced_loss.1} parent=1 // pred_check
      _
    $region59: #{advanced_loss.1} parent=1 // pred_check_branch
      %102 = sbr.rel (0) target = $region61
    $region60: #{advanced_loss.1} parent=1 // pred_region
      %103 = dma.done [#allocation11], 256
    $region61: #{advanced_loss.1} parent=1 // pred_fallthru
      _
    // Predicated region
    $region62: #{advanced_loss.1} parent=1 // pred_check
      _
    $region63: #{advanced_loss.1} parent=1 // pred_check_branch
      %105 = sbr.rel (0) target = $region65
    $region64: #{advanced_loss.1} parent=1 // pred_region
      %106 = dma.done [#allocation11], 768
    $region65: #{advanced_loss.1} parent=1 // pred_fallthru
      _
    // Predicated region
    $region66: #{advanced_loss.1} parent=1 // pred_check
      _
    $region67: #{advanced_loss.1} parent=1 // pred_check_branch
      %108 = sbr.rel (0) target = $region69
    $region68: #{advanced_loss.1} parent=1 // pred_region
      %109 = dma.done [#allocation14], 128
    $region69: #{advanced_loss.1} parent=1 // pred_fallthru
      _
    %s111 = sshll.u32 1, 14
    %s112 = sxor.u32 4294967295, %s111
    %s114 = sld [smem:[#allocation0]]
    %s115 = sadd.s32 2, %s114
    %s117 = sshll.u32 7, 26
    %s118 = sxor.u32 4294967295, %s117
    %s119 = sand.u32 0, %s118
    %s120 = sshll.u32 %s115, 26
    %s121 = sor.u32 %s119, %s120
    %s122 = sshll.u32 [#allocation2], 4
    %s123 = int_to_ptr.vmem [resolvable:$true] %s122
    %126 = sst [smem:[#allocation17]] 512
    %s127 = scalar_lea.smem [#allocation17], 1
    %128 = sst [smem:[%s127]] 512
    %s129 = scalar_lea.smem [#allocation17], 2
    %130 = sst [smem:[%s129]] 4
    %s131 = scalar_lea.smem [#allocation17], 3
    %132 = sst [smem:[%s131]] 64
    %s133 = scalar_lea.smem [#allocation17], 4
    %134 = sst [smem:[%s133]] 128
    %s135 = scalar_lea.smem [#allocation17], 5
    %136 = sst [smem:[%s135]] 2
    %s137 = scalar_lea.smem [#allocation17], 6
    %138 = sst [smem:[%s137]] 256
    %s139 = scalar_lea.smem [#allocation17], 7
    %140 = sst [smem:[%s139]] 64
    %s141 = scalar_lea.smem [#allocation17], 8
    %142 = sst [smem:[%s141]] 4
    %144 = dma.general %s11, 24576, %s123, [#allocation3], [#allocation16], [#allocation17], %s121, 0
    %v145 = vlaneseq
    %v146 = vshrl.u32 %v145, 7
    %v147 = vlaneseq
    %v148 = vand.u32 %v147, 127
    %vm149 = vcmp.ne.s32.totalorder %v146, %v148
    %v150 = vsel %vm149, 1, 0
    %v151 = vcvt.s32.f32 %v150
    %v152 = vld [vmem:[#allocation4] sm:$0xff]
    %v153 = vld [vmem:[#allocation4 + $0x8] sm:$0xff]
    %v154 = vmul.f32 %v152, %v152
    %v155 = vmul.f32 %v153, %v153
    %v156 = vadd.f32 %v154, %v155
    %157 = vadd.xlane.f32.xlu0 %v156
    %v158 = vpop.xlane.xlu0 %157
    %v159 = vmax.f32 %v158, 1e-24
    %v160 = vrsqrt.pop %v159
    %v161 = vmul.f32 %v152, %v160
    %v162 = vmul.f32 %v153, %v160
    %v163 = vld [vmem:[#allocation10] sm:$0xff]
    %v164 = vld [vmem:[#allocation10 + $0x8] sm:$0xff]
    %v165 = vmul.f32 %v163, %v163
    %v166 = vmul.f32 %v164, %v164
    %v167 = vadd.f32 %v165, %v166
    %168 = vadd.xlane.f32.xlu0 %v167
    %v169 = vpop.xlane.xlu0 %168
    %v170 = vmax.f32 %v169, 1e-24
    %v171 = vrsqrt.pop %v170
    %v172 = vmul.f32 %v163, %v171
    %v173 = vmul.f32 %v164, %v171
    %v174 = vld [vmem:[#allocation7] sm:$0xff]
    %v175 = vld [vmem:[#allocation7 + $0x8] sm:$0xff]
    %v176 = vmul.f32 %v174, %v174
    %v177 = vmul.f32 %v175, %v175
    %v178 = vadd.f32 %v176, %v177
    %179 = vadd.xlane.f32.xlu0 %v178
    %v180 = vpop.xlane.xlu0 %179
    %v181 = vmax.f32 %v180, 1e-24
    %v182 = vrsqrt.pop %v181
    %v183 = vmul.f32 %v174, %v182
    %v184 = vmul.f32 %v175, %v182
    %v185 = vmul.f32 %v183, 10.0
    %v186 = vmul.f32 %v184, 10.0
    %v187 = vld [vmem:[#allocation9] sm:$0xff]
    %v188 = vld [vmem:[#allocation9 + $0x8] sm:$0xff]
    %v189 = vmul.f32 %v187, %v187
    %v190 = vmul.f32 %v188, %v188
    %v191 = vadd.f32 %v189, %v190
    %192 = vadd.xlane.f32.xlu0 %v191
    %v193 = vpop.xlane.xlu0 %192
    %v194 = vmax.f32 %v193, 1e-24
    %v195 = vrsqrt.pop %v194
    %v196 = vmul.f32 %v187, %v195
    %v197 = vmul.f32 %v188, %v195
    %v198 = vmul.f32 %v196, 10.0
    %v199 = vmul.f32 %v197, 10.0
    %200 = vmatprep.subr.mxu0 %v186
    %201 = vmatpush1.xpose.msra.mxu0 %v185
    %202 = vmatprep.subr.mxu0 %v199
    %203 = vmatpush1.xpose.msra.mxu0 %v198
    %204 = vmatprep.subr.mxu0 0.0
    %205 = vmatpush1.xpose.msra.mxu0 0.0
    %206 = vmatprep.subr.mxu0 0.0
    %207 = vmatpush1.xpose.msra.mxu0 0.0
    %208 = vmatprep.subr.mxu0 0.0
    %209 = vmatpush1.xpose.msra.mxu0 0.0
    %210 = vmatprep.subr.mxu0 0.0
    %211 = vmatpush1.xpose.msra.mxu0 0.0
    %212 = vmatprep.subr.mxu0 0.0
    %213 = vmatpush1.xpose.msra.mxu0 0.0
    %214 = vmatprep.subr.mxu0 0.0
    %215 = vmatpush1.xpose.msra.mxu0 0.0
    %216 = vmatprep.subr.mxu0 0.0
    %217 = vmatpush1.xpose.msra.mxu0 0.0
    %218 = vmatprep.subr.mxu0 0.0
    %219 = vmatpush1.xpose.msra.mxu0 0.0
    %220 = vmatprep.subr.mxu0 0.0
    %221 = vmatpush1.xpose.msra.mxu0 0.0
    %222 = vmatprep.subr.mxu0 0.0
    %223 = vmatpush1.xpose.msra.mxu0 0.0
    %224 = vmatprep.subr.mxu0 0.0
    %225 = vmatpush1.xpose.msra.mxu0 0.0
    %226 = vmatprep.subr.mxu0 0.0
    %227 = vmatpush1.xpose.msra.mxu0 0.0
    %228 = vmatprep.subr.mxu0 0.0
    %229 = vmatpush1.xpose.msra.mxu0 0.0
    %230 = vmatprep.subr.mxu0 0.0
    %231 = vmatpush1.xpose.msra.mxu0 0.0
    %232 = vmatprep.subr.mxu0 0.0
    %233 = vmatpush1.xpose.msra.mxu0 0.0
    %234 = vmatprep.subr.mxu0 0.0
    %235 = vmatpush1.xpose.msra.mxu0 0.0
    %236 = vmatprep.subr.mxu0 0.0
    %237 = vmatpush1.xpose.msra.mxu0 0.0
    %238 = vmatprep.subr.mxu0 0.0
    %239 = vmatpush1.xpose.msra.mxu0 0.0
    %240 = vmatprep.subr.mxu0 0.0
    %241 = vmatpush1.xpose.msra.mxu0 0.0
    %242 = vmatprep.subr.mxu0 0.0
    %243 = vmatpush1.xpose.msra.mxu0 0.0
    %244 = vmatprep.subr.mxu0 0.0
    %245 = vmatpush1.xpose.msra.mxu0 0.0
    %246 = vmatprep.subr.mxu0 0.0
    %247 = vmatpush1.xpose.msra.mxu0 0.0
    %248 = vmatprep.subr.mxu0 0.0
    %249 = vmatpush1.xpose.msra.mxu0 0.0
    %250 = vmatprep.subr.mxu0 0.0
    %251 = vmatpush1.xpose.msra.mxu0 0.0
    %252 = vmatprep.subr.mxu0 0.0
    %253 = vmatpush1.xpose.msra.mxu0 0.0
    %254 = vmatprep.subr.mxu0 0.0
    %255 = vmatpush1.xpose.msra.mxu0 0.0
    %256 = vmatprep.subr.mxu0 0.0
    %257 = vmatpush1.xpose.msra.mxu0 0.0
    %258 = vmatprep.subr.mxu0 0.0
    %259 = vmatpush1.xpose.msra.mxu0 0.0
    %260 = vmatprep.subr.mxu0 0.0
    %261 = vmatpush1.xpose.msra.mxu0 0.0
    %262 = vmatprep.subr.mxu0 0.0
    %263 = vmatpush1.xpose.msra.mxu0 0.0
    %264 = vmatprep.mubr.f32.mxu0 %v162
    %265 = vmatmul.mubr.f32.gmra.mrb[0].mxu0 %v161
    %v266 = vpop.f32.mrb[0].mxu0
    %v267 = vadd.f32 0.0, %v266
    %v268 = vpop.f32.mrb[0].mxu0
    %269 = vmatprep.mubr.f32.mxu0 %v173
    %270 = vmatmul.mubr.f32.gmra.mrb[0].mxu0 %v172
    %v271 = vpop.f32.mrb[0].mxu0
    %v272 = vadd.f32 0.0, %v271
    %v273 = vpop.f32.mrb[0].mxu0
    %274 = vdwg.mxu0
    %v275 = vmul.f32 %v161, %v185
    %v276 = vmul.f32 %v162, %v186
    %v277 = vadd.f32 %v275, %v276
    %278 = vadd.xlane.f32.xlu0 %v277
    %v279 = vpop.xlane.xlu0 %278
    %v280 = vmul.f32 %v172, %v198
    %v281 = vmul.f32 %v173, %v199
    %v282 = vadd.f32 %v280, %v281
    %283 = vadd.xlane.f32.xlu0 %v282
    %v284 = vpop.xlane.xlu0 %283
    %vm285 = vcmask 64512
    %v286 = vsel %vm285, %v267, -inf
    %287 = vmax.xlane.f32.xlu0 %v286
    %v288 = vpop.xlane.xlu0 %287
    %v289 = vsub.f32 %v267, %v288
    %v290 = vmul.f32 %v289, 1.442695
    %v291 = vpow.pop %v290
    %v292 = vsel %vm285, %v291, 0.0
    %293 = vadd.xlane.f32.xlu0 %v292
    %v294 = vpop.xlane.xlu0 %293
    %v295 = vlog2.pop %v294
    %v296 = vmul.f32 %v295, 0.6931472
    %v297 = vadd.f32 %v288, %v296
    %v298 = vsub.f32 %v297, %v279
    %vm299 = vcmask 7168
    %v300 = vsel %vm299, %v298, 0.0
    %301 = vadd.xlane.f32.xlu0 %v300
    %v302 = vpop.xlane.xlu0 %301
    %v303 = vrot.slane %v302, 4
    %v304 = vadd.f32 %v302, %v303
    %v305 = vrot.slane %v304, 2
    %v306 = vadd.f32 %v304, %v305
    %v307 = vrot.slane %v306, 1
    %v308 = vadd.f32 %v306, %v307
    %s309 = vtos %v308
    %v310 = vrcp.pop 8.0
    %s311 = vtos %v310
    %s312 = smul.f32 %s309, %s311
    %v313 = vrot.slane %v286, 4
    %v314 = vmax.f32 %v286, %v313
    %v315 = vrot.slane %v314, 2
    %v316 = vmax.f32 %v314, %v315
    %v317 = vrot.slane %v316, 1
    %v318 = vmax.f32 %v316, %v317
    %v319 = vsub.f32 %v267, %v318
    %v320 = vmul.f32 %v319, 1.442695
    %v321 = vpow.pop %v320
    %v322 = vsel %vm285, %v321, 0.0
    %v323 = vrot.slane %v322, 4
    %v324 = vadd.f32 %v322, %v323
    %v325 = vrot.slane %v324, 2
    %v326 = vadd.f32 %v324, %v325
    %v327 = vrot.slane %v326, 1
    %v328 = vadd.f32 %v326, %v327
    %v329 = vlog2.pop %v328
    %v330 = vmul.f32 %v329, 0.6931472
    %v331 = vadd.f32 %v318, %v330
    %vm332 = vcmask 57344
    %v333 = vsel %vm332, %v331, 0.0
    %334 = vadd.xlane.f32.xlu0 %v333
    %v335 = vpop.xlane.xlu0 %334
    %v336 = vrot.slane %v335, 4
    %v337 = vadd.f32 %v335, %v336
    %v338 = vrot.slane %v337, 2
    %v339 = vadd.f32 %v337, %v338
    %v340 = vrot.slane %v339, 1
    %v341 = vadd.f32 %v339, %v340
    %s342 = vtos %v341
    %v343 = vrcp.pop 8.0
    %s344 = vtos %v343
    %s345 = smul.f32 %s342, %s344
    %v346 = vsel %vm299, %v279, 0.0
    %347 = vadd.xlane.f32.xlu0 %v346
    %v348 = vpop.xlane.xlu0 %347
    %v349 = vrot.slane %v348, 4
    %v350 = vadd.f32 %v348, %v349
    %v351 = vrot.slane %v350, 2
    %v352 = vadd.f32 %v350, %v351
    %v353 = vrot.slane %v352, 1
    %v354 = vadd.f32 %v352, %v353
    %s355 = vtos %v354
    %v356 = vrcp.pop 8.0
    %s357 = vtos %v356
    %s358 = smul.f32 %s355, %s357
    %s359 = ssub.f32 %s345, %s358
    %s360 = sadd.f32 %s312, %s359
    %s361 = smul.f32 %s360, 0.5
    %vm362 = vcmask 130112
    %v363 = vsel %vm362, %v272, -inf
    %364 = vmax.xlane.f32.xlu0 %v363
    %v365 = vpop.xlane.xlu0 %364
    %v366 = vsub.f32 %v272, %v365
    %v367 = vmul.f32 %v366, 1.442695
    %v368 = vpow.pop %v367
    %370 = vrot.lane.b32.xlu0 %v368, 120
    %v371 = vpop.permute.xlu0 %370
    %v373 = vsel %vm285, %v371, 0.0
    %374 = vadd.xlane.f32.xlu0 %v373
    %v375 = vpop.xlane.xlu0 %374
    %v376 = vlog2.pop %v375
    %v377 = vmul.f32 %v376, 0.6931472
    %v378 = vadd.f32 %v365, %v377
    %v379 = vsub.f32 %v378, %v284
    %v380 = vsel %vm299, %v379, 0.0
    %381 = vadd.xlane.f32.xlu0 %v380
    %v382 = vpop.xlane.xlu0 %381
    %v383 = vrot.slane %v382, 4
    %v384 = vadd.f32 %v382, %v383
    %v385 = vrot.slane %v384, 2
    %v386 = vadd.f32 %v384, %v385
    %v387 = vrot.slane %v386, 1
    %v388 = vadd.f32 %v386, %v387
    %s389 = vtos %v388
    %v390 = vrcp.pop 8.0
    %s391 = vtos %v390
    %s392 = smul.f32 %s389, %s391
    %v393 = vrot.slane %v363, 4
    %v394 = vmax.f32 %v363, %v393
    %v395 = vrot.slane %v394, 2
    %v396 = vmax.f32 %v394, %v395
    %v397 = vrot.slane %v396, 1
    %v398 = vmax.f32 %v396, %v397
    %v399 = vsub.f32 %v272, %v398
    %v400 = vmul.f32 %v399, 1.442695
    %v401 = vpow.pop %v400
    %v402 = vsel %vm362, %v401, 0.0
    %v403 = vrot.slane %v402, 4
    %v404 = vadd.f32 %v402, %v403
    %v405 = vrot.slane %v404, 2
    %v406 = vadd.f32 %v404, %v405
    %v407 = vrot.slane %v406, 1
    %v408 = vadd.f32 %v406, %v407
    %v409 = vlog2.pop %v408
    %v410 = vmul.f32 %v409, 0.6931472
    %v411 = vadd.f32 %v398, %v410
    %413 = vrot.lane.b32.xlu0 %v411, 120
    %v414 = vpop.permute.xlu0 %413
    %v416 = vsel %vm332, %v414, 0.0
    %417 = vadd.xlane.f32.xlu0 %v416
    %v418 = vpop.xlane.xlu0 %417
    %v419 = vrot.slane %v418, 4
    %v420 = vadd.f32 %v418, %v419
    %v421 = vrot.slane %v420, 2
    %v422 = vadd.f32 %v420, %v421
    %v423 = vrot.slane %v422, 1
    %v424 = vadd.f32 %v422, %v423
    %s425 = vtos %v424
    %v426 = vrcp.pop 8.0
    %s427 = vtos %v426
    %s428 = smul.f32 %s425, %s427
    %v429 = vsel %vm299, %v284, 0.0
    %430 = vadd.xlane.f32.xlu0 %v429
    %v431 = vpop.xlane.xlu0 %430
    %v432 = vrot.slane %v431, 4
    %v433 = vadd.f32 %v431, %v432
    %v434 = vrot.slane %v433, 2
    %v435 = vadd.f32 %v433, %v434
    %v436 = vrot.slane %v435, 1
    %v437 = vadd.f32 %v435, %v436
    %s438 = vtos %v437
    %v439 = vrcp.pop 8.0
    %s440 = vtos %v439
    %s441 = smul.f32 %s438, %s440
    %s442 = ssub.f32 %s428, %s441
    %s443 = sadd.f32 %s392, %s442
    %s444 = smul.f32 %s443, 0.5
    %v445 = vld [vmem:[#allocation13] sm:$0xff]
    %v446 = vld [vmem:[%s7] sm:$0xff]
    %447 = vset.pattern.permute.xlu0 0
    %448 = vperm.xlu0 %447, %v446
    %v449 = vpop.permute.xlu0 %448
    %vm450 = vcmp.eq.s32.totalorder %v148, %v449
    %v451 = vsel %vm450, 1, 0
    %v452 = vcvt.s32.f32 %v451
    %v453 = vmul.f32 %v445, %v452
    %vm454 = vcmask 130048
    %v455 = vsel %vm454, %v453, 0.0
    %456 = vadd.xlane.f32.xlu0 %v455
    %v457 = vpop.xlane.xlu0 %456
    %v458 = vsel %vm454, %v445, -inf
    %459 = vmax.xlane.f32.xlu0 %v458
    %v460 = vpop.xlane.xlu0 %459
    %v461 = vsub.f32 %v445, %v460
    %v462 = vmul.f32 %v461, 1.442695
    %v463 = vpow.pop %v462
    %v464 = vsel %vm454, %v463, 0.0
    %465 = vadd.xlane.f32.xlu0 %v464
    %v466 = vpop.xlane.xlu0 %465
    %v467 = vlog2.pop %v466
    %v468 = vmul.f32 %v467, 0.6931472
    %v469 = vadd.f32 %v460, %v468
    %v470 = vsub.f32 %v469, %v457
    %v471 = vsel %vm299, %v470, 0.0
    %472 = vadd.xlane.f32.xlu0 %v471
    %v473 = vpop.xlane.xlu0 %472
    %v474 = vrot.slane %v473, 4
    %v475 = vadd.f32 %v473, %v474
    %v476 = vrot.slane %v475, 2
    %v477 = vadd.f32 %v475, %v476
    %v478 = vrot.slane %v477, 1
    %v479 = vadd.f32 %v477, %v478
    %s480 = vtos %v479
    %v481 = vrcp.pop 8.0
    %s482 = vtos %v481
    %s483 = smul.f32 %s480, %s482
    %v484 = vld [vmem:[%s8] sm:$0xff]
    %v485 = vsub.f32 %v484, 0.5
    %v486 = vmul.f32 %v485, %v485
    %vm487 = vcmask 31744
    %v488 = vsel %vm487, %v486, 0.0
    %489 = vadd.xlane.f32.xlu0 %v488
    %v490 = vpop.xlane.xlu0 %489
    %v491 = vrot.slane %v490, 4
    %v492 = vadd.f32 %v490, %v491
    %v493 = vrot.slane %v492, 2
    %v494 = vadd.f32 %v492, %v493
    %v495 = vrot.slane %v494, 1
    %v496 = vadd.f32 %v494, %v495
    %s497 = vtos %v496
    %v498 = vrcp.pop 32.0
    %s499 = vtos %v498
    %s500 = smul.f32 %s497, %s499
    %v501 = vld [vmem:[%s9] sm:$0xff]
    %v502 = vsub.f32 %v501, 0.5
    %v503 = vmul.f32 %v502, %v502
    %v504 = vsel %vm487, %v503, 0.0
    %505 = vadd.xlane.f32.xlu0 %v504
    %v506 = vpop.xlane.xlu0 %505
    %v507 = vrot.slane %v506, 4
    %v508 = vadd.f32 %v506, %v507
    %v509 = vrot.slane %v508, 2
    %v510 = vadd.f32 %v508, %v509
    %v511 = vrot.slane %v510, 1
    %v512 = vadd.f32 %v510, %v511
    %s513 = vtos %v512
    %v514 = vrcp.pop 32.0
    %s515 = vtos %v514
    %s516 = smul.f32 %s513, %s515
    %s517 = smul.u32 4, 96
    %s518 = smul.u32 %s517, 4
    %s519 = sshll.u32 %s518, 4
    %520 = dma.done [#allocation3], %s519
    %v521 = vld [vmem:[%s4] sm:$0xff]
    %v522 = vld [vmem:[%s4 + $0x8] sm:$0xff]
    %v523 = vld [vmem:[%s4 + $0x10] sm:$0xff]
    %v524 = vld [vmem:[%s4 + $0x18] sm:$0xff]
    %v525 = vld [vmem:[%s4 + $0x20] sm:$0xff]
    %v526 = vld [vmem:[%s4 + $0x28] sm:$0xff]
    %v527 = vld [vmem:[#allocation12] sm:$0xff]
    %v528 = vld [vmem:[#allocation12 + $0x8] sm:$0xff]
    %v529 = vld [vmem:[#allocation12 + $0x10] sm:$0xff]
    %v530 = vld [vmem:[#allocation12 + $0x18] sm:$0xff]
    %v531 = vld [vmem:[#allocation12 + $0x20] sm:$0xff]
    %v532 = vld [vmem:[#allocation12 + $0x28] sm:$0xff]
    %v533 = vpack.c.bf16 %v527, %v521
    %v534 = vpack.c.bf16 %v528, %v522
    %v535 = vpack.c.bf16 %v529, %v523
    %v536 = vpack.c.bf16 %v530, %v524
    %v537 = vpack.c.bf16 %v531, %v525
    %v538 = vpack.c.bf16 %v532, %v526
    %v539 = vld [vmem:[#allocation2] sm:$0xff]
    %v540 = vld [vmem:[#allocation2 + $0x8] sm:$0xff]
    %v541 = vld [vmem:[#allocation2 + $0x10] sm:$0xff]
    %v542 = vld [vmem:[#allocation2 + $0x18] sm:$0xff]
    %v543 = vld [vmem:[#allocation2 + $0x20] sm:$0xff]
    %v544 = vld [vmem:[#allocation2 + $0x28] sm:$0xff]
    %v545 = vld [vmem:[#allocation2 + $0x30] sm:$0xff]
    %v546 = vld [vmem:[#allocation2 + $0x38] sm:$0xff]
    %v547 = vld [vmem:[#allocation2 + $0x40] sm:$0xff]
    %v548 = vld [vmem:[#allocation2 + $0x48] sm:$0xff]
    %v549 = vld [vmem:[#allocation2 + $0x50] sm:$0xff]
    %v550 = vld [vmem:[#allocation2 + $0x58] sm:$0xff]
    %v551 = vld [vmem:[#allocation2 + $0x60] sm:$0xff]
    %v552 = vld [vmem:[#allocation2 + $0x68] sm:$0xff]
    %v553 = vld [vmem:[#allocation2 + $0x70] sm:$0xff]
    %v554 = vld [vmem:[#allocation2 + $0x78] sm:$0xff]
    %v555 = vld [vmem:[#allocation2 + $0x80] sm:$0xff]
    %v556 = vld [vmem:[#allocation2 + $0x88] sm:$0xff]
    %v557 = vld [vmem:[#allocation2 + $0x90] sm:$0xff]
    %v558 = vld [vmem:[#allocation2 + $0x98] sm:$0xff]
    %v559 = vld [vmem:[#allocation2 + $0xa0] sm:$0xff]
    %v560 = vld [vmem:[#allocation2 + $0xa8] sm:$0xff]
    %v561 = vld [vmem:[#allocation2 + $0xb0] sm:$0xff]
    %v562 = vld [vmem:[#allocation2 + $0xb8] sm:$0xff]
    %v563 = vld [vmem:[#allocation2 + $0xc0] sm:$0xff]
    %v564 = vld [vmem:[#allocation2 + $0xc8] sm:$0xff]
    %v565 = vld [vmem:[#allocation2 + $0xd0] sm:$0xff]
    %v566 = vld [vmem:[#allocation2 + $0xd8] sm:$0xff]
    %v567 = vld [vmem:[#allocation2 + $0xe0] sm:$0xff]
    %v568 = vld [vmem:[#allocation2 + $0xe8] sm:$0xff]
    %v569 = vld [vmem:[#allocation2 + $0xf0] sm:$0xff]
    %v570 = vld [vmem:[#allocation2 + $0xf8] sm:$0xff]
    %v571 = vld [vmem:[#allocation2 + $0x100] sm:$0xff]
    %v572 = vld [vmem:[#allocation2 + $0x108] sm:$0xff]
    %v573 = vld [vmem:[#allocation2 + $0x110] sm:$0xff]
    %v574 = vld [vmem:[#allocation2 + $0x118] sm:$0xff]
    %v575 = vld [vmem:[#allocation2 + $0x120] sm:$0xff]
    %v576 = vld [vmem:[#allocation2 + $0x128] sm:$0xff]
    %v577 = vld [vmem:[#allocation2 + $0x130] sm:$0xff]
    %v578 = vld [vmem:[#allocation2 + $0x138] sm:$0xff]
    %v579 = vld [vmem:[#allocation2 + $0x140] sm:$0xff]
    %v580 = vld [vmem:[#allocation2 + $0x148] sm:$0xff]
    %v581 = vld [vmem:[#allocation2 + $0x150] sm:$0xff]
    %v582 = vld [vmem:[#allocation2 + $0x158] sm:$0xff]
    %v583 = vld [vmem:[#allocation2 + $0x160] sm:$0xff]
    %v584 = vld [vmem:[#allocation2 + $0x168] sm:$0xff]
    %v585 = vld [vmem:[#allocation2 + $0x170] sm:$0xff]
    %v586 = vld [vmem:[#allocation2 + $0x178] sm:$0xff]
    %v587 = vld [vmem:[#allocation2 + $0x180] sm:$0xff]
    %v588 = vld [vmem:[#allocation2 + $0x188] sm:$0xff]
    %v589 = vld [vmem:[#allocation2 + $0x190] sm:$0xff]
    %v590 = vld [vmem:[#allocation2 + $0x198] sm:$0xff]
    %v591 = vld [vmem:[#allocation2 + $0x1a0] sm:$0xff]
    %v592 = vld [vmem:[#allocation2 + $0x1a8] sm:$0xff]
    %v593 = vld [vmem:[#allocation2 + $0x1b0] sm:$0xff]
    %v594 = vld [vmem:[#allocation2 + $0x1b8] sm:$0xff]
    %v595 = vld [vmem:[#allocation2 + $0x1c0] sm:$0xff]
    %v596 = vld [vmem:[#allocation2 + $0x1c8] sm:$0xff]
    %v597 = vld [vmem:[#allocation2 + $0x1d0] sm:$0xff]
    %v598 = vld [vmem:[#allocation2 + $0x1d8] sm:$0xff]
    %v599 = vld [vmem:[#allocation2 + $0x1e0] sm:$0xff]
    %v600 = vld [vmem:[#allocation2 + $0x1e8] sm:$0xff]
    %v601 = vld [vmem:[#allocation2 + $0x1f0] sm:$0xff]
    %v602 = vld [vmem:[#allocation2 + $0x1f8] sm:$0xff]
    %v603 = vld [vmem:[#allocation2 + $0x200] sm:$0xff]
    %v604 = vld [vmem:[#allocation2 + $0x208] sm:$0xff]
    %v605 = vld [vmem:[#allocation2 + $0x210] sm:$0xff]
    %v606 = vld [vmem:[#allocation2 + $0x218] sm:$0xff]
    %v607 = vld [vmem:[#allocation2 + $0x220] sm:$0xff]
    %v608 = vld [vmem:[#allocation2 + $0x228] sm:$0xff]
    %v609 = vld [vmem:[#allocation2 + $0x230] sm:$0xff]
    %v610 = vld [vmem:[#allocation2 + $0x238] sm:$0xff]
    %v611 = vld [vmem:[#allocation2 + $0x240] sm:$0xff]
    %v612 = vld [vmem:[#allocation2 + $0x248] sm:$0xff]
    %v613 = vld [vmem:[#allocation2 + $0x250] sm:$0xff]
    %v614 = vld [vmem:[#allocation2 + $0x258] sm:$0xff]
    %v615 = vld [vmem:[#allocation2 + $0x260] sm:$0xff]
    %v616 = vld [vmem:[#allocation2 + $0x268] sm:$0xff]
    %v617 = vld [vmem:[#allocation2 + $0x270] sm:$0xff]
    %v618 = vld [vmem:[#allocation2 + $0x278] sm:$0xff]
    %v619 = vld [vmem:[#allocation2 + $0x280] sm:$0xff]
    %v620 = vld [vmem:[#allocation2 + $0x288] sm:$0xff]
    %v621 = vld [vmem:[#allocation2 + $0x290] sm:$0xff]
    %v622 = vld [vmem:[#allocation2 + $0x298] sm:$0xff]
    %v623 = vld [vmem:[#allocation2 + $0x2a0] sm:$0xff]
    %v624 = vld [vmem:[#allocation2 + $0x2a8] sm:$0xff]
    %v625 = vld [vmem:[#allocation2 + $0x2b0] sm:$0xff]
    %v626 = vld [vmem:[#allocation2 + $0x2b8] sm:$0xff]
    %v627 = vld [vmem:[#allocation2 + $0x2c0] sm:$0xff]
    %v628 = vld [vmem:[#allocation2 + $0x2c8] sm:$0xff]
    %v629 = vld [vmem:[#allocation2 + $0x2d0] sm:$0xff]
    %v630 = vld [vmem:[#allocation2 + $0x2d8] sm:$0xff]
    %v631 = vld [vmem:[#allocation2 + $0x2e0] sm:$0xff]
    %v632 = vld [vmem:[#allocation2 + $0x2e8] sm:$0xff]
    %v633 = vld [vmem:[#allocation2 + $0x2f0] sm:$0xff]
    %v634 = vld [vmem:[#allocation2 + $0x2f8] sm:$0xff]
    %v635 = vld [vmem:[#allocation2 + $0x300] sm:$0xff]
    %v636 = vld [vmem:[#allocation2 + $0x308] sm:$0xff]
    %v637 = vld [vmem:[#allocation2 + $0x310] sm:$0xff]
    %v638 = vld [vmem:[#allocation2 + $0x318] sm:$0xff]
    %v639 = vld [vmem:[#allocation2 + $0x320] sm:$0xff]
    %v640 = vld [vmem:[#allocation2 + $0x328] sm:$0xff]
    %v641 = vld [vmem:[#allocation2 + $0x330] sm:$0xff]
    %v642 = vld [vmem:[#allocation2 + $0x338] sm:$0xff]
    %v643 = vld [vmem:[#allocation2 + $0x340] sm:$0xff]
    %v644 = vld [vmem:[#allocation2 + $0x348] sm:$0xff]
    %v645 = vld [vmem:[#allocation2 + $0x350] sm:$0xff]
    %v646 = vld [vmem:[#allocation2 + $0x358] sm:$0xff]
    %v647 = vld [vmem:[#allocation2 + $0x360] sm:$0xff]
    %v648 = vld [vmem:[#allocation2 + $0x368] sm:$0xff]
    %v649 = vld [vmem:[#allocation2 + $0x370] sm:$0xff]
    %v650 = vld [vmem:[#allocation2 + $0x378] sm:$0xff]
    %v651 = vld [vmem:[#allocation2 + $0x380] sm:$0xff]
    %v652 = vld [vmem:[#allocation2 + $0x388] sm:$0xff]
    %v653 = vld [vmem:[#allocation2 + $0x390] sm:$0xff]
    %v654 = vld [vmem:[#allocation2 + $0x398] sm:$0xff]
    %v655 = vld [vmem:[#allocation2 + $0x3a0] sm:$0xff]
    %v656 = vld [vmem:[#allocation2 + $0x3a8] sm:$0xff]
    %v657 = vld [vmem:[#allocation2 + $0x3b0] sm:$0xff]
    %v658 = vld [vmem:[#allocation2 + $0x3b8] sm:$0xff]
    %v659 = vld [vmem:[#allocation2 + $0x3c0] sm:$0xff]
    %v660 = vld [vmem:[#allocation2 + $0x3c8] sm:$0xff]
    %v661 = vld [vmem:[#allocation2 + $0x3d0] sm:$0xff]
    %v662 = vld [vmem:[#allocation2 + $0x3d8] sm:$0xff]
    %v663 = vld [vmem:[#allocation2 + $0x3e0] sm:$0xff]
    %v664 = vld [vmem:[#allocation2 + $0x3e8] sm:$0xff]
    %v665 = vld [vmem:[#allocation2 + $0x3f0] sm:$0xff]
    %v666 = vld [vmem:[#allocation2 + $0x3f8] sm:$0xff]
    %v667 = vld [vmem:[#allocation2 + $0x400] sm:$0xff]
    %v668 = vld [vmem:[#allocation2 + $0x408] sm:$0xff]
    %v669 = vld [vmem:[#allocation2 + $0x410] sm:$0xff]
    %v670 = vld [vmem:[#allocation2 + $0x418] sm:$0xff]
    %v671 = vld [vmem:[#allocation2 + $0x420] sm:$0xff]
    %v672 = vld [vmem:[#allocation2 + $0x428] sm:$0xff]
    %v673 = vld [vmem:[#allocation2 + $0x430] sm:$0xff]
    %v674 = vld [vmem:[#allocation2 + $0x438] sm:$0xff]
    %v675 = vld [vmem:[#allocation2 + $0x440] sm:$0xff]
    %v676 = vld [vmem:[#allocation2 + $0x448] sm:$0xff]
    %v677 = vld [vmem:[#allocation2 + $0x450] sm:$0xff]
    %v678 = vld [vmem:[#allocation2 + $0x458] sm:$0xff]
    %v679 = vld [vmem:[#allocation2 + $0x460] sm:$0xff]
    %v680 = vld [vmem:[#allocation2 + $0x468] sm:$0xff]
    %v681 = vld [vmem:[#allocation2 + $0x470] sm:$0xff]
    %v682 = vld [vmem:[#allocation2 + $0x478] sm:$0xff]
    %v683 = vld [vmem:[#allocation2 + $0x480] sm:$0xff]
    %v684 = vld [vmem:[#allocation2 + $0x488] sm:$0xff]
    %v685 = vld [vmem:[#allocation2 + $0x490] sm:$0xff]
    %v686 = vld [vmem:[#allocation2 + $0x498] sm:$0xff]
    %v687 = vld [vmem:[#allocation2 + $0x4a0] sm:$0xff]
    %v688 = vld [vmem:[#allocation2 + $0x4a8] sm:$0xff]
    %v689 = vld [vmem:[#allocation2 + $0x4b0] sm:$0xff]
    %v690 = vld [vmem:[#allocation2 + $0x4b8] sm:$0xff]
    %v691 = vld [vmem:[#allocation2 + $0x4c0] sm:$0xff]
    %v692 = vld [vmem:[#allocation2 + $0x4c8] sm:$0xff]
    %v693 = vld [vmem:[#allocation2 + $0x4d0] sm:$0xff]
    %v694 = vld [vmem:[#allocation2 + $0x4d8] sm:$0xff]
    %v695 = vld [vmem:[#allocation2 + $0x4e0] sm:$0xff]
    %v696 = vld [vmem:[#allocation2 + $0x4e8] sm:$0xff]
    %v697 = vld [vmem:[#allocation2 + $0x4f0] sm:$0xff]
    %v698 = vld [vmem:[#allocation2 + $0x4f8] sm:$0xff]
    %v699 = vld [vmem:[#allocation2 + $0x500] sm:$0xff]
    %v700 = vld [vmem:[#allocation2 + $0x508] sm:$0xff]
    %v701 = vld [vmem:[#allocation2 + $0x510] sm:$0xff]
    %v702 = vld [vmem:[#allocation2 + $0x518] sm:$0xff]
    %v703 = vld [vmem:[#allocation2 + $0x520] sm:$0xff]
    %v704 = vld [vmem:[#allocation2 + $0x528] sm:$0xff]
    %v705 = vld [vmem:[#allocation2 + $0x530] sm:$0xff]
    %v706 = vld [vmem:[#allocation2 + $0x538] sm:$0xff]
    %v707 = vld [vmem:[#allocation2 + $0x540] sm:$0xff]
    %v708 = vld [vmem:[#allocation2 + $0x548] sm:$0xff]
    %v709 = vld [vmem:[#allocation2 + $0x550] sm:$0xff]
    %v710 = vld [vmem:[#allocation2 + $0x558] sm:$0xff]
    %v711 = vld [vmem:[#allocation2 + $0x560] sm:$0xff]
    %v712 = vld [vmem:[#allocation2 + $0x568] sm:$0xff]
    %v713 = vld [vmem:[#allocation2 + $0x570] sm:$0xff]
    %v714 = vld [vmem:[#allocation2 + $0x578] sm:$0xff]
    %v715 = vld [vmem:[#allocation2 + $0x580] sm:$0xff]
    %v716 = vld [vmem:[#allocation2 + $0x588] sm:$0xff]
    %v717 = vld [vmem:[#allocation2 + $0x590] sm:$0xff]
    %v718 = vld [vmem:[#allocation2 + $0x598] sm:$0xff]
    %v719 = vld [vmem:[#allocation2 + $0x5a0] sm:$0xff]
    %v720 = vld [vmem:[#allocation2 + $0x5a8] sm:$0xff]
    %v721 = vld [vmem:[#allocation2 + $0x5b0] sm:$0xff]
    %v722 = vld [vmem:[#allocation2 + $0x5b8] sm:$0xff]
    %v723 = vld [vmem:[#allocation2 + $0x5c0] sm:$0xff]
    %v724 = vld [vmem:[#allocation2 + $0x5c8] sm:$0xff]
    %v725 = vld [vmem:[#allocation2 + $0x5d0] sm:$0xff]
    %v726 = vld [vmem:[#allocation2 + $0x5d8] sm:$0xff]
    %v727 = vld [vmem:[#allocation2 + $0x5e0] sm:$0xff]
    %v728 = vld [vmem:[#allocation2 + $0x5e8] sm:$0xff]
    %v729 = vld [vmem:[#allocation2 + $0x5f0] sm:$0xff]
    %v730 = vld [vmem:[#allocation2 + $0x5f8] sm:$0xff]
    %731 = vmatprep.subr.bf16.mxu0 %v540
    %732 = vmatpush1.bf16.msra.mxu0 %v539
    %733 = vmatprep.subr.bf16.mxu0 %v544
    %734 = vmatpush1.bf16.msra.mxu0 %v543
    %735 = vmatprep.subr.bf16.mxu0 %v548
    %736 = vmatpush1.bf16.msra.mxu0 %v547
    %737 = vmatprep.subr.bf16.mxu0 %v552
    %738 = vmatpush1.bf16.msra.mxu0 %v551
    %739 = vmatprep.subr.bf16.mxu0 %v556
    %740 = vmatpush1.bf16.msra.mxu0 %v555
    %741 = vmatprep.subr.bf16.mxu0 %v560
    %742 = vmatpush1.bf16.msra.mxu0 %v559
    %743 = vmatprep.subr.bf16.mxu0 %v564
    %744 = vmatpush1.bf16.msra.mxu0 %v563
    %745 = vmatprep.subr.bf16.mxu0 %v568
    %746 = vmatpush1.bf16.msra.mxu0 %v567
    %747 = vmatprep.subr.bf16.mxu0 %v572
    %748 = vmatpush1.bf16.msra.mxu0 %v571
    %749 = vmatprep.subr.bf16.mxu0 %v576
    %750 = vmatpush1.bf16.msra.mxu0 %v575
    %751 = vmatprep.subr.bf16.mxu0 %v580
    %752 = vmatpush1.bf16.msra.mxu0 %v579
    %753 = vmatprep.subr.bf16.mxu0 %v584
    %754 = vmatpush1.bf16.msra.mxu0 %v583
    %755 = vmatprep.subr.bf16.mxu0 %v588
    %756 = vmatpush1.bf16.msra.mxu0 %v587
    %757 = vmatprep.subr.bf16.mxu0 %v592
    %758 = vmatpush1.bf16.msra.mxu0 %v591
    %759 = vmatprep.subr.bf16.mxu0 %v596
    %760 = vmatpush1.bf16.msra.mxu0 %v595
    %761 = vmatprep.subr.bf16.mxu0 %v600
    %762 = vmatpush1.bf16.msra.mxu0 %v599
    %763 = vmatprep.mubr.bf16.mxu0 %v534
    %764 = vmatmul.mubr.bf16.gmra.mrb[0].mxu0 %v533
    %v765 = vpop.f32.mrb[0].mxu0
    %v766 = vadd.f32 0.0, %v765
    %v767 = vpop.f32.mrb[0].mxu0
    %v768 = vadd.f32 0.0, %v767
    %v769 = vpop.f32.mrb[0].mxu0
    %v770 = vpop.f32.mrb[0].mxu0
    %771 = vdwg.mxu0
    %772 = vmatprep.subr.bf16.mxu0 %v604
    %773 = vmatpush1.bf16.msra.mxu0 %v603
    %774 = vmatprep.subr.bf16.mxu0 %v608
    %775 = vmatpush1.bf16.msra.mxu0 %v607
    %776 = vmatprep.subr.bf16.mxu0 %v612
    %777 = vmatpush1.bf16.msra.mxu0 %v611
    %778 = vmatprep.subr.bf16.mxu0 %v616
    %779 = vmatpush1.bf16.msra.mxu0 %v615
    %780 = vmatprep.subr.bf16.mxu0 %v620
    %781 = vmatpush1.bf16.msra.mxu0 %v619
    %782 = vmatprep.subr.bf16.mxu0 %v624
    %783 = vmatpush1.bf16.msra.mxu0 %v623
    %784 = vmatprep.subr.bf16.mxu0 %v628
    %785 = vmatpush1.bf16.msra.mxu0 %v627
    %786 = vmatprep.subr.bf16.mxu0 %v632
    %787 = vmatpush1.bf16.msra.mxu0 %v631
    %788 = vmatprep.subr.bf16.mxu0 %v636
    %789 = vmatpush1.bf16.msra.mxu0 %v635
    %790 = vmatprep.subr.bf16.mxu0 %v640
    %791 = vmatpush1.bf16.msra.mxu0 %v639
    %792 = vmatprep.subr.bf16.mxu0 %v644
    %793 = vmatpush1.bf16.msra.mxu0 %v643
    %794 = vmatprep.subr.bf16.mxu0 %v648
    %795 = vmatpush1.bf16.msra.mxu0 %v647
    %796 = vmatprep.subr.bf16.mxu0 %v652
    %797 = vmatpush1.bf16.msra.mxu0 %v651
    %798 = vmatprep.subr.bf16.mxu0 %v656
    %799 = vmatpush1.bf16.msra.mxu0 %v655
    %800 = vmatprep.subr.bf16.mxu0 %v660
    %801 = vmatpush1.bf16.msra.mxu0 %v659
    %802 = vmatprep.subr.bf16.mxu0 %v664
    %803 = vmatpush1.bf16.msra.mxu0 %v663
    %804 = vmatprep.mubr.bf16.mxu0 %v536
    %805 = vmatmul.mubr.bf16.gmra.mrb[0].mxu0 %v535
    %v806 = vpop.f32.mrb[0].mxu0
    %v807 = vadd.f32 %v766, %v806
    %v808 = vpop.f32.mrb[0].mxu0
    %v809 = vadd.f32 %v768, %v808
    %v810 = vpop.f32.mrb[0].mxu0
    %v811 = vpop.f32.mrb[0].mxu0
    %812 = vdwg.mxu0
    %813 = vmatprep.subr.bf16.mxu0 %v668
    %814 = vmatpush1.bf16.msra.mxu0 %v667
    %815 = vmatprep.subr.bf16.mxu0 %v672
    %816 = vmatpush1.bf16.msra.mxu0 %v671
    %817 = vmatprep.subr.bf16.mxu0 %v676
    %818 = vmatpush1.bf16.msra.mxu0 %v675
    %819 = vmatprep.subr.bf16.mxu0 %v680
    %820 = vmatpush1.bf16.msra.mxu0 %v679
    %821 = vmatprep.subr.bf16.mxu0 %v684
    %822 = vmatpush1.bf16.msra.mxu0 %v683
    %823 = vmatprep.subr.bf16.mxu0 %v688
    %824 = vmatpush1.bf16.msra.mxu0 %v687
    %825 = vmatprep.subr.bf16.mxu0 %v692
    %826 = vmatpush1.bf16.msra.mxu0 %v691
    %827 = vmatprep.subr.bf16.mxu0 %v696
    %828 = vmatpush1.bf16.msra.mxu0 %v695
    %829 = vmatprep.subr.bf16.mxu0 %v700
    %830 = vmatpush1.bf16.msra.mxu0 %v699
    %831 = vmatprep.subr.bf16.mxu0 %v704
    %832 = vmatpush1.bf16.msra.mxu0 %v703
    %833 = vmatprep.subr.bf16.mxu0 %v708
    %834 = vmatpush1.bf16.msra.mxu0 %v707
    %835 = vmatprep.subr.bf16.mxu0 %v712
    %836 = vmatpush1.bf16.msra.mxu0 %v711
    %837 = vmatprep.subr.bf16.mxu0 %v716
    %838 = vmatpush1.bf16.msra.mxu0 %v715
    %839 = vmatprep.subr.bf16.mxu0 %v720
    %840 = vmatpush1.bf16.msra.mxu0 %v719
    %841 = vmatprep.subr.bf16.mxu0 %v724
    %842 = vmatpush1.bf16.msra.mxu0 %v723
    %843 = vmatprep.subr.bf16.mxu0 %v728
    %844 = vmatpush1.bf16.msra.mxu0 %v727
    %845 = vmatprep.mubr.bf16.mxu0 %v538
    %846 = vmatmul.mubr.bf16.gmra.mrb[0].mxu0 %v537
    %v847 = vpop.f32.mrb[0].mxu0
    %v848 = vadd.f32 %v807, %v847
    %v849 = vpop.f32.mrb[0].mxu0
    %v850 = vadd.f32 %v809, %v849
    %v851 = vpop.f32.mrb[0].mxu0
    %v852 = vpop.f32.mrb[0].mxu0
    %853 = vdwg.mxu0
    %854 = vmatprep.subr.bf16.mxu0 %v542
    %855 = vmatpush1.bf16.msra.mxu0 %v541
    %856 = vmatprep.subr.bf16.mxu0 %v546
    %857 = vmatpush1.bf16.msra.mxu0 %v545
    %858 = vmatprep.subr.bf16.mxu0 %v550
    %859 = vmatpush1.bf16.msra.mxu0 %v549
    %860 = vmatprep.subr.bf16.mxu0 %v554
    %861 = vmatpush1.bf16.msra.mxu0 %v553
    %862 = vmatprep.subr.bf16.mxu0 %v558
    %863 = vmatpush1.bf16.msra.mxu0 %v557
    %864 = vmatprep.subr.bf16.mxu0 %v562
    %865 = vmatpush1.bf16.msra.mxu0 %v561
    %866 = vmatprep.subr.bf16.mxu0 %v566
    %867 = vmatpush1.bf16.msra.mxu0 %v565
    %868 = vmatprep.subr.bf16.mxu0 %v570
    %869 = vmatpush1.bf16.msra.mxu0 %v569
    %870 = vmatprep.subr.bf16.mxu0 %v574
    %871 = vmatpush1.bf16.msra.mxu0 %v573
    %872 = vmatprep.subr.bf16.mxu0 %v578
    %873 = vmatpush1.bf16.msra.mxu0 %v577
    %874 = vmatprep.subr.bf16.mxu0 %v582
    %875 = vmatpush1.bf16.msra.mxu0 %v581
    %876 = vmatprep.subr.bf16.mxu0 %v586
    %877 = vmatpush1.bf16.msra.mxu0 %v585
    %878 = vmatprep.subr.bf16.mxu0 %v590
    %879 = vmatpush1.bf16.msra.mxu0 %v589
    %880 = vmatprep.subr.bf16.mxu0 %v594
    %881 = vmatpush1.bf16.msra.mxu0 %v593
    %882 = vmatprep.subr.bf16.mxu0 %v598
    %883 = vmatpush1.bf16.msra.mxu0 %v597
    %884 = vmatprep.subr.bf16.mxu0 %v602
    %885 = vmatpush1.bf16.msra.mxu0 %v601
    %886 = vmatprep.mubr.bf16.mxu0 %v534
    %887 = vmatmul.mubr.bf16.gmra.mrb[0].mxu0 %v533
    %v888 = vpop.f32.mrb[0].mxu0
    %v889 = vpop.f32.mrb[0].mxu0
    %v890 = vpop.f32.mrb[0].mxu0
    %v891 = vadd.f32 0.0, %v890
    %v892 = vpop.f32.mrb[0].mxu0
    %v893 = vadd.f32 0.0, %v892
    %894 = vdwg.mxu0
    %895 = vmatprep.subr.bf16.mxu0 %v606
    %896 = vmatpush1.bf16.msra.mxu0 %v605
    %897 = vmatprep.subr.bf16.mxu0 %v610
    %898 = vmatpush1.bf16.msra.mxu0 %v609
    %899 = vmatprep.subr.bf16.mxu0 %v614
    %900 = vmatpush1.bf16.msra.mxu0 %v613
    %901 = vmatprep.subr.bf16.mxu0 %v618
    %902 = vmatpush1.bf16.msra.mxu0 %v617
    %903 = vmatprep.subr.bf16.mxu0 %v622
    %904 = vmatpush1.bf16.msra.mxu0 %v621
    %905 = vmatprep.subr.bf16.mxu0 %v626
    %906 = vmatpush1.bf16.msra.mxu0 %v625
    %907 = vmatprep.subr.bf16.mxu0 %v630
    %908 = vmatpush1.bf16.msra.mxu0 %v629
    %909 = vmatprep.subr.bf16.mxu0 %v634
    %910 = vmatpush1.bf16.msra.mxu0 %v633
    %911 = vmatprep.subr.bf16.mxu0 %v638
    %912 = vmatpush1.bf16.msra.mxu0 %v637
    %913 = vmatprep.subr.bf16.mxu0 %v642
    %914 = vmatpush1.bf16.msra.mxu0 %v641
    %915 = vmatprep.subr.bf16.mxu0 %v646
    %916 = vmatpush1.bf16.msra.mxu0 %v645
    %917 = vmatprep.subr.bf16.mxu0 %v650
    %918 = vmatpush1.bf16.msra.mxu0 %v649
    %919 = vmatprep.subr.bf16.mxu0 %v654
    %920 = vmatpush1.bf16.msra.mxu0 %v653
    %921 = vmatprep.subr.bf16.mxu0 %v658
    %922 = vmatpush1.bf16.msra.mxu0 %v657
    %923 = vmatprep.subr.bf16.mxu0 %v662
    %924 = vmatpush1.bf16.msra.mxu0 %v661
    %925 = vmatprep.subr.bf16.mxu0 %v666
    %926 = vmatpush1.bf16.msra.mxu0 %v665
    %927 = vmatprep.mubr.bf16.mxu0 %v536
    %928 = vmatmul.mubr.bf16.gmra.mrb[0].mxu0 %v535
    %v929 = vpop.f32.mrb[0].mxu0
    %v930 = vpop.f32.mrb[0].mxu0
    %v931 = vpop.f32.mrb[0].mxu0
    %v932 = vadd.f32 %v891, %v931
    %v933 = vpop.f32.mrb[0].mxu0
    %v934 = vadd.f32 %v893, %v933
    %935 = vdwg.mxu0
    %936 = vmatprep.subr.bf16.mxu0 %v670
    %937 = vmatpush1.bf16.msra.mxu0 %v669
    %938 = vmatprep.subr.bf16.mxu0 %v674
    %939 = vmatpush1.bf16.msra.mxu0 %v673
    %940 = vmatprep.subr.bf16.mxu0 %v678
    %941 = vmatpush1.bf16.msra.mxu0 %v677
    %942 = vmatprep.subr.bf16.mxu0 %v682
    %943 = vmatpush1.bf16.msra.mxu0 %v681
    %944 = vmatprep.subr.bf16.mxu0 %v686
    %945 = vmatpush1.bf16.msra.mxu0 %v685
    %946 = vmatprep.subr.bf16.mxu0 %v690
    %947 = vmatpush1.bf16.msra.mxu0 %v689
    %948 = vmatprep.subr.bf16.mxu0 %v694
    %949 = vmatpush1.bf16.msra.mxu0 %v693
    %950 = vmatprep.subr.bf16.mxu0 %v698
    %951 = vmatpush1.bf16.msra.mxu0 %v697
    %952 = vmatprep.subr.bf16.mxu0 %v702
    %953 = vmatpush1.bf16.msra.mxu0 %v701
    %954 = vmatprep.subr.bf16.mxu0 %v706
    %955 = vmatpush1.bf16.msra.mxu0 %v705
    %956 = vmatprep.subr.bf16.mxu0 %v710
    %957 = vmatpush1.bf16.msra.mxu0 %v709
    %958 = vmatprep.subr.bf16.mxu0 %v714
    %959 = vmatpush1.bf16.msra.mxu0 %v713
    %960 = vmatprep.subr.bf16.mxu0 %v718
    %961 = vmatpush1.bf16.msra.mxu0 %v717
    %962 = vmatprep.subr.bf16.mxu0 %v722
    %963 = vmatpush1.bf16.msra.mxu0 %v721
    %964 = vmatprep.subr.bf16.mxu0 %v726
    %965 = vmatpush1.bf16.msra.mxu0 %v725
    %966 = vmatprep.subr.bf16.mxu0 %v730
    %967 = vmatpush1.bf16.msra.mxu0 %v729
    %968 = vmatprep.mubr.bf16.mxu0 %v538
    %969 = vmatmul.mubr.bf16.gmra.mrb[0].mxu0 %v537
    %v970 = vpop.f32.mrb[0].mxu0
    %v971 = vpop.f32.mrb[0].mxu0
    %v972 = vpop.f32.mrb[0].mxu0
    %v973 = vadd.f32 %v932, %v972
    %v974 = vpop.f32.mrb[0].mxu0
    %v975 = vadd.f32 %v934, %v974
    %976 = vdwg.mxu0
    %v977 = vld [vmem:[%s10] ss:$2 sm:$0x3]
    %v979 = vlaneseq
    %v980 = vshrl.u32 %v979, 7
    %v981 = vsub.s32 0, %v980
    %v982 = vrot.slane %v977, %v981
    %v983 = vlaneseq
    %v984 = vshrl.u32 %v983, 7
    %v985 = vsub.s32 1, %v984
    %v986 = vrot.slane %v977, %v985
    %v989 = vadd.f32 %v848, %v982
    %v990 = vadd.f32 %v850, %v986
    %v991 = vmul.f32 %v989, %v989
    %v992 = vmul.f32 %v990, %v990
    %v993 = vadd.f32 %v991, %v992
    %994 = vadd.xlane.f32.xlu0 %v993
    %v995 = vpop.xlane.xlu0 %994
    %v996 = vmax.f32 %v995, 1e-24
    %v997 = vrsqrt.pop %v996
    %v998 = vmul.f32 %v989, %v997
    %v999 = vmul.f32 %v990, %v997
    %s1000 = scalar_lea.vmem %s10, 1
    %v1001 = vld [vmem:[%s1000] ss:$2 sm:$0x3]
    %v1003 = vlaneseq
    %v1004 = vshrl.u32 %v1003, 7
    %v1005 = vsub.s32 0, %v1004
    %v1006 = vrot.slane %v1001, %v1005
    %v1007 = vlaneseq
    %v1008 = vshrl.u32 %v1007, 7
    %v1009 = vsub.s32 1, %v1008
    %v1010 = vrot.slane %v1001, %v1009
    %v1013 = vadd.f32 %v973, %v1006
    %v1014 = vadd.f32 %v975, %v1010
    %v1015 = vmul.f32 %v1013, %v1013
    %v1016 = vmul.f32 %v1014, %v1014
    %v1017 = vadd.f32 %v1015, %v1016
    %1018 = vadd.xlane.f32.xlu0 %v1017
    %v1019 = vpop.xlane.xlu0 %1018
    %v1020 = vmax.f32 %v1019, 1e-24
    %v1021 = vrsqrt.pop %v1020
    %v1022 = vmul.f32 %v1013, %v1021
    %v1023 = vmul.f32 %v1014, %v1021
    %1024 = vmatprep.subr.mxu0 %v186
    %1025 = vmatpush1.xpose.msra.mxu0 %v185
    %1026 = vmatprep.subr.mxu0 %v199
    %1027 = vmatpush1.xpose.msra.mxu0 %v198
    %1028 = vmatprep.subr.mxu0 0.0
    %1029 = vmatpush1.xpose.msra.mxu0 0.0
    %1030 = vmatprep.subr.mxu0 0.0
    %1031 = vmatpush1.xpose.msra.mxu0 0.0
    %1032 = vmatprep.subr.mxu0 0.0
    %1033 = vmatpush1.xpose.msra.mxu0 0.0
    %1034 = vmatprep.subr.mxu0 0.0
    %1035 = vmatpush1.xpose.msra.mxu0 0.0
    %1036 = vmatprep.subr.mxu0 0.0
    %1037 = vmatpush1.xpose.msra.mxu0 0.0
    %1038 = vmatprep.subr.mxu0 0.0
    %1039 = vmatpush1.xpose.msra.mxu0 0.0
    %1040 = vmatprep.subr.mxu0 0.0
    %1041 = vmatpush1.xpose.msra.mxu0 0.0
    %1042 = vmatprep.subr.mxu0 0.0
    %1043 = vmatpush1.xpose.msra.mxu0 0.0
    %1044 = vmatprep.subr.mxu0 0.0
    %1045 = vmatpush1.xpose.msra.mxu0 0.0
    %1046 = vmatprep.subr.mxu0 0.0
    %1047 = vmatpush1.xpose.msra.mxu0 0.0
    %1048 = vmatprep.subr.mxu0 0.0
    %1049 = vmatpush1.xpose.msra.mxu0 0.0
    %1050 = vmatprep.subr.mxu0 0.0
    %1051 = vmatpush1.xpose.msra.mxu0 0.0
    %1052 = vmatprep.subr.mxu0 0.0
    %1053 = vmatpush1.xpose.msra.mxu0 0.0
    %1054 = vmatprep.subr.mxu0 0.0
    %1055 = vmatpush1.xpose.msra.mxu0 0.0
    %1056 = vmatprep.subr.mxu0 0.0
    %1057 = vmatpush1.xpose.msra.mxu0 0.0
    %1058 = vmatprep.subr.mxu0 0.0
    %1059 = vmatpush1.xpose.msra.mxu0 0.0
    %1060 = vmatprep.subr.mxu0 0.0
    %1061 = vmatpush1.xpose.msra.mxu0 0.0
    %1062 = vmatprep.subr.mxu0 0.0
    %1063 = vmatpush1.xpose.msra.mxu0 0.0
    %1064 = vmatprep.subr.mxu0 0.0
    %1065 = vmatpush1.xpose.msra.mxu0 0.0
    %1066 = vmatprep.subr.mxu0 0.0
    %1067 = vmatpush1.xpose.msra.mxu0 0.0
    %1068 = vmatprep.subr.mxu0 0.0
    %1069 = vmatpush1.xpose.msra.mxu0 0.0
    %1070 = vmatprep.subr.mxu0 0.0
    %1071 = vmatpush1.xpose.msra.mxu0 0.0
    %1072 = vmatprep.subr.mxu0 0.0
    %1073 = vmatpush1.xpose.msra.mxu0 0.0
    %1074 = vmatprep.subr.mxu0 0.0
    %1075 = vmatpush1.xpose.msra.mxu0 0.0
    %1076 = vmatprep.subr.mxu0 0.0
    %1077 = vmatpush1.xpose.msra.mxu0 0.0
    %1078 = vmatprep.subr.mxu0 0.0
    %1079 = vmatpush1.xpose.msra.mxu0 0.0
    %1080 = vmatprep.subr.mxu0 0.0
    %1081 = vmatpush1.xpose.msra.mxu0 0.0
    %1082 = vmatprep.subr.mxu0 0.0
    %1083 = vmatpush1.xpose.msra.mxu0 0.0
    %1084 = vmatprep.subr.mxu0 0.0
    %1085 = vmatpush1.xpose.msra.mxu0 0.0
    %1086 = vmatprep.subr.mxu0 0.0
    %1087 = vmatpush1.xpose.msra.mxu0 0.0
    %1088 = vmatprep.mubr.f32.mxu0 %v999
    %1089 = vmatmul.mubr.f32.gmra.mrb[0].mxu0 %v998
    %v1090 = vpop.f32.mrb[0].mxu0
    %v1091 = vadd.f32 0.0, %v1090
    %v1092 = vpop.f32.mrb[0].mxu0
    %1093 = vmatprep.mubr.f32.mxu0 %v1023
    %1094 = vmatmul.mubr.f32.gmra.mrb[0].mxu0 %v1022
    %v1095 = vpop.f32.mrb[0].mxu0
    %v1096 = vadd.f32 0.0, %v1095
    %v1097 = vpop.f32.mrb[0].mxu0
    %1098 = vdwg.mxu0
    %v1099 = vmul.f32 %v998, %v185
    %v1100 = vmul.f32 %v999, %v186
    %v1101 = vadd.f32 %v1099, %v1100
    %1102 = vadd.xlane.f32.xlu0 %v1101
    %v1103 = vpop.xlane.xlu0 %1102
    %v1104 = vsel %vm285, %v1091, -inf
    %1105 = vmax.xlane.f32.xlu0 %v1104
    %v1106 = vpop.xlane.xlu0 %1105
    %v1107 = vsub.f32 %v1091, %v1106
    %v1108 = vmul.f32 %v1107, 1.442695
    %v1109 = vpow.pop %v1108
    %v1110 = vsel %vm285, %v1109, 0.0
    %1111 = vadd.xlane.f32.xlu0 %v1110
    %v1112 = vpop.xlane.xlu0 %1111
    %v1113 = vlog2.pop %v1112
    %v1114 = vmul.f32 %v1113, 0.6931472
    %v1115 = vadd.f32 %v1106, %v1114
    %v1116 = vsub.f32 %v1115, %v1103
    %v1117 = vsel %vm299, %v1116, 0.0
    %1118 = vadd.xlane.f32.xlu0 %v1117
    %v1119 = vpop.xlane.xlu0 %1118
    %v1120 = vrot.slane %v1119, 4
    %v1121 = vadd.f32 %v1119, %v1120
    %v1122 = vrot.slane %v1121, 2
    %v1123 = vadd.f32 %v1121, %v1122
    %v1124 = vrot.slane %v1123, 1
    %v1125 = vadd.f32 %v1123, %v1124
    %s1126 = vtos %v1125
    %v1127 = vrcp.pop 8.0
    %s1128 = vtos %v1127
    %s1129 = smul.f32 %s1126, %s1128
    %v1130 = vmul.f32 %v1022, %v198
    %v1131 = vmul.f32 %v1023, %v199
    %v1132 = vadd.f32 %v1130, %v1131
    %1133 = vadd.xlane.f32.xlu0 %v1132
    %v1134 = vpop.xlane.xlu0 %1133
    %v1135 = vsel %vm362, %v1096, -inf
    %1136 = vmax.xlane.f32.xlu0 %v1135
    %v1137 = vpop.xlane.xlu0 %1136
    %v1138 = vsub.f32 %v1096, %v1137
    %v1139 = vmul.f32 %v1138, 1.442695
    %v1140 = vpow.pop %v1139
    %1142 = vrot.lane.b32.xlu0 %v1140, 120
    %v1143 = vpop.permute.xlu0 %1142
    %v1145 = vsel %vm285, %v1143, 0.0
    %1146 = vadd.xlane.f32.xlu0 %v1145
    %v1147 = vpop.xlane.xlu0 %1146
    %v1148 = vlog2.pop %v1147
    %v1149 = vmul.f32 %v1148, 0.6931472
    %v1150 = vadd.f32 %v1137, %v1149
    %v1151 = vsub.f32 %v1150, %v1134
    %v1152 = vsel %vm299, %v1151, 0.0
    %1153 = vadd.xlane.f32.xlu0 %v1152
    %v1154 = vpop.xlane.xlu0 %1153
    %v1155 = vrot.slane %v1154, 4
    %v1156 = vadd.f32 %v1154, %v1155
    %v1157 = vrot.slane %v1156, 2
    %v1158 = vadd.f32 %v1156, %v1157
    %v1159 = vrot.slane %v1158, 1
    %v1160 = vadd.f32 %v1158, %v1159
    %s1161 = vtos %v1160
    %v1162 = vrcp.pop 8.0
    %s1163 = vtos %v1162
    %s1164 = smul.f32 %s1161, %s1163
    %1166 = vrot.lane.b32.xlu0 %v151, 8
    %v1167 = vpop.permute.xlu0 %1166
    %v1169 = vmul.f32 %v1096, %v1167
    %v1170 = vsel %vm362, %v1169, -inf
    %1171 = vmax.xlane.f32.xlu0 %v1170
    %v1172 = vpop.xlane.xlu0 %1171
    %v1173 = vsub.f32 %v1169, %v1172
    %v1174 = vmul.f32 %v1173, 1.442695
    %v1175 = vpow.pop %v1174
    %1177 = vrot.lane.b32.xlu0 %v1175, 120
    %v1178 = vpop.permute.xlu0 %1177
    %v1180 = vsel %vm285, %v1178, 0.0
    %1181 = vadd.xlane.f32.xlu0 %v1180
    %v1182 = vpop.xlane.xlu0 %1181
    %v1183 = vlog2.pop %v1182
    %v1184 = vmul.f32 %v1183, 0.6931472
    %v1185 = vadd.f32 %v1172, %v1184
    %v1186 = vsub.f32 %v1185, %v1169
    %1188 = vrot.lane.b32.xlu0 %v1186, 120
    %v1189 = vpop.permute.xlu0 %1188
    %v1191 = vsel %vm285, %v1189, 0.0
    %1192 = vadd.xlane.f32.xlu0 %v1191
    %v1193 = vpop.xlane.xlu0 %1192
    %v1194 = vrot.slane %v1193, 4
    %v1195 = vadd.f32 %v1193, %v1194
    %v1196 = vrot.slane %v1195, 2
    %v1197 = vadd.f32 %v1195, %v1196
    %v1198 = vrot.slane %v1197, 1
    %v1199 = vadd.f32 %v1197, %v1198
    %s1200 = vtos %v1199
    %v1201 = vrcp.pop 64.0
    %s1202 = vtos %v1201
    %s1203 = smul.f32 %s1200, %s1202
    %1204 = vmatprep.subr.mxu0 %v999
    %1205 = vmatpush1.xpose.msra.mxu0 %v998
    %1206 = vmatprep.subr.mxu0 %v1023
    %1207 = vmatpush1.xpose.msra.mxu0 %v1022
    %1208 = vmatprep.subr.mxu0 0.0
    %1209 = vmatpush1.xpose.msra.mxu0 0.0
    %1210 = vmatprep.subr.mxu0 0.0
    %1211 = vmatpush1.xpose.msra.mxu0 0.0
    %1212 = vmatprep.subr.mxu0 0.0
    %1213 = vmatpush1.xpose.msra.mxu0 0.0
    %1214 = vmatprep.subr.mxu0 0.0
    %1215 = vmatpush1.xpose.msra.mxu0 0.0
    %1216 = vmatprep.subr.mxu0 0.0
    %1217 = vmatpush1.xpose.msra.mxu0 0.0
    %1218 = vmatprep.subr.mxu0 0.0
    %1219 = vmatpush1.xpose.msra.mxu0 0.0
    %1220 = vmatprep.subr.mxu0 0.0
    %1221 = vmatpush1.xpose.msra.mxu0 0.0
    %1222 = vmatprep.subr.mxu0 0.0
    %1223 = vmatpush1.xpose.msra.mxu0 0.0
    %1224 = vmatprep.subr.mxu0 0.0
    %1225 = vmatpush1.xpose.msra.mxu0 0.0
    %1226 = vmatprep.subr.mxu0 0.0
    %1227 = vmatpush1.xpose.msra.mxu0 0.0
    %1228 = vmatprep.subr.mxu0 0.0
    %1229 = vmatpush1.xpose.msra.mxu0 0.0
    %1230 = vmatprep.subr.mxu0 0.0
    %1231 = vmatpush1.xpose.msra.mxu0 0.0
    %1232 = vmatprep.subr.mxu0 0.0
    %1233 = vmatpush1.xpose.msra.mxu0 0.0
    %1234 = vmatprep.subr.mxu0 0.0
    %1235 = vmatpush1.xpose.msra.mxu0 0.0
    %1236 = vmatprep.subr.mxu0 0.0
    %1237 = vmatpush1.xpose.msra.mxu0 0.0
    %1238 = vmatprep.subr.mxu0 0.0
    %1239 = vmatpush1.xpose.msra.mxu0 0.0
    %1240 = vmatprep.subr.mxu0 0.0
    %1241 = vmatpush1.xpose.msra.mxu0 0.0
    %1242 = vmatprep.subr.mxu0 0.0
    %1243 = vmatpush1.xpose.msra.mxu0 0.0
    %1244 = vmatprep.subr.mxu0 0.0
    %1245 = vmatpush1.xpose.msra.mxu0 0.0
    %1246 = vmatprep.subr.mxu0 0.0
    %1247 = vmatpush1.xpose.msra.mxu0 0.0
    %1248 = vmatprep.subr.mxu0 0.0
    %1249 = vmatpush1.xpose.msra.mxu0 0.0
    %1250 = vmatprep.subr.mxu0 0.0
    %1251 = vmatpush1.xpose.msra.mxu0 0.0
    %1252 = vmatprep.subr.mxu0 0.0
    %1253 = vmatpush1.xpose.msra.mxu0 0.0
    %1254 = vmatprep.subr.mxu0 0.0
    %1255 = vmatpush1.xpose.msra.mxu0 0.0
    %1256 = vmatprep.subr.mxu0 0.0
    %1257 = vmatpush1.xpose.msra.mxu0 0.0
    %1258 = vmatprep.subr.mxu0 0.0
    %1259 = vmatpush1.xpose.msra.mxu0 0.0
    %1260 = vmatprep.subr.mxu0 0.0
    %1261 = vmatpush1.xpose.msra.mxu0 0.0
    %1262 = vmatprep.subr.mxu0 0.0
    %1263 = vmatpush1.xpose.msra.mxu0 0.0
    %1264 = vmatprep.subr.mxu0 0.0
    %1265 = vmatpush1.xpose.msra.mxu0 0.0
    %1266 = vmatprep.subr.mxu0 0.0
    %1267 = vmatpush1.xpose.msra.mxu0 0.0
    %1268 = vmatprep.mubr.f32.mxu0 %v999
    %1269 = vmatmul.mubr.f32.gmra.mrb[0].mxu0 %v998
    %v1270 = vpop.f32.mrb[0].mxu0
    %v1271 = vadd.f32 0.0, %v1270
    %v1272 = vpop.f32.mrb[0].mxu0
    %1273 = vmatprep.mubr.f32.mxu0 %v1023
    %1274 = vmatmul.mubr.f32.gmra.mrb[0].mxu0 %v1022
    %v1275 = vpop.f32.mrb[0].mxu0
    %v1276 = vadd.f32 0.0, %v1275
    %v1277 = vpop.f32.mrb[0].mxu0
    %1278 = vdwg.mxu0
    %v1279 = vmul.f32 %v1271, %v151
    %v1280 = vmul.f32 %v1276, %v1167
    %1282 = vrot.lane.b32.xlu0 %v1280, 120
    %v1283 = vpop.permute.xlu0 %1282
    %v1285 = vmul.f32 %v1279, %v1283
    %v1286 = vsel %vm285, %v1285, 0.0
    %1287 = vadd.xlane.f32.xlu0 %v1286
    %v1288 = vpop.xlane.xlu0 %1287
    %v1289 = vrot.slane %v1288, 4
    %v1290 = vadd.f32 %v1288, %v1289
    %v1291 = vrot.slane %v1290, 2
    %v1292 = vadd.f32 %v1290, %v1291
    %v1293 = vrot.slane %v1292, 1
    %v1294 = vadd.f32 %v1292, %v1293
    %s1295 = vtos %v1294
    %v1296 = vrcp.pop 64.0
    %s1297 = vtos %v1296
    %s1298 = smul.f32 %s1295, %s1297
    %v1299 = vrcp.pop 7.0
    %s1300 = vtos %v1299
    %s1301 = smul.f32 %s1298, %s1300
    %s1302 = sadd.f32 %s361, 0.0
    %s1303 = sadd.f32 %s1302, %s483
    %s1304 = smul.f32 %s1129, 0.5
    %s1305 = sadd.f32 %s1303, %s1304
    %s1306 = smul.f32 %s1164, 0.5
    %s1307 = sadd.f32 %s1305, %s1306
    %s1308 = smul.f32 %s1203, 0.1
    %s1309 = sadd.f32 %s1307, %s1308
    %s1310 = sadd.f32 %s1309, %s444
    %s1311 = smul.f32 %s1301, 0.2
    %s1312 = sadd.f32 %s1310, %s1311
    %s1313 = smul.f32 %s500, 0.01
    %s1314 = sadd.f32 %s1312, %s1313
    %s1315 = smul.f32 %s516, 0.01
    %s1316 = sadd.f32 %s1314, %s1315
    %s1317 = scalar_lea.smem [#allocation15], 0
    %1318 = sst [smem:[%s1317]] %s361
    %s1319 = scalar_lea.smem [#allocation15], 1
    %1320 = sst [smem:[%s1319]] %s483
    %s1321 = scalar_lea.smem [#allocation15], 2
    %1322 = sst [smem:[%s1321]] %s1129
    %s1323 = scalar_lea.smem [#allocation15], 3
    %1324 = sst [smem:[%s1323]] %s1164
    %s1325 = scalar_lea.smem [#allocation15], 4
    %1326 = sst [smem:[%s1325]] %s1203
    %s1327 = scalar_lea.smem [#allocation15], 5
    %1328 = sst [smem:[%s1327]] %s444
    %s1329 = scalar_lea.smem [#allocation15], 6
    %1330 = sst [smem:[%s1329]] %s1301
    %s1331 = scalar_lea.smem [#allocation15], 7
    %1332 = sst [smem:[%s1331]] %s500
    %s1333 = scalar_lea.smem [#allocation15], 8
    %1334 = sst [smem:[%s1333]] %s516
    %s1335 = scalar_lea.smem [#allocation15], 9
    %1336 = sst [smem:[%s1335]] %s1316
    // Predicated region
    $region70: #{advanced_loss.1} parent=1 // pred_check
      _
    $region71: #{advanced_loss.1} parent=1 // pred_check_branch
      %1338 = sbr.rel (0) target = $region73
    $region72: #{advanced_loss.1} parent=1 // pred_region
      %s1340 = ssub.s32 16, 16
      %1341 = vsyncadd [#allocation6], %s1340
      %s1343 = sshll.u32 %s12, 4
      %s1344 = int_to_ptr.vmem [resolvable:$true] %s1343
      %1346 = dma.smem_to_vmem [#allocation15], 16, %s1344, [#allocation6]
    $region73: #{advanced_loss.1} parent=1 // pred_fallthru
      _
    // Predicated region
    $region74: #{advanced_loss.1} parent=1 // pred_check
      _
    $region75: #{advanced_loss.1} parent=1 // pred_check_branch
      %1348 = sbr.rel (0) target = $region77
    $region76: #{advanced_loss.1} parent=1 // pred_region
      %1349 = dma.done [#allocation6], 16
    $region77: #{advanced_loss.1} parent=1 // pred_fallthru
      _
    %1350 = sfence
    %1351 = vsyncpa [#allocation5], 1
    %1352 = vsyncpa [#allocation8], 1
    %1353 = vsyncpa [#allocation11], 1
    %1354 = vsyncpa [#allocation14], 1
    %1355 = vsyncpa [#allocation6], 1
  %1356 = vsyncmov [#allocation3]
  %s1357 = vpop.sfrf %1356
  %p1358 = scmp.eq.s32.totalorder %s1357, 0
  %p1359 = pneg %p1358
  %1361 = shalt.err (%p1359)

</llo_original>
